<compile_context>
chip_gen: v6e
topology: v6e:2x2x1
jax: 0.10.0
libtpu: 0.0.40
codegen_flags: <defaults>
</compile_context>

<pallas_src>
import functools

import jax
import jax.numpy as jnp
from jax.experimental import pallas as pl
from jax.experimental.pallas import tpu as pltpu


def _round_up(n, m):
    return ((n + m - 1) // m) * m


def _gru_disc_kernel(x_ref, w_ih3_ref, w_hh3_ref, b_i3_ref, b_hn_ref,
                     w_fc_ref, b_fc_ref,
                     logit_ref, prob_ref,
                     h_s, gi_s):
    """One (batch_block, time_chunk) grid step.

    x_ref : (Tc*Bb, I)    chunk of inputs, time-major within the chunk
    h_s   : (Bb, Hp)      hidden state carried across time chunks (VMEM scratch)
    gi_s  : (Tc*Bb, 3Hp)  fused input projection for this chunk (VMEM scratch)
    """
    c = pl.program_id(1)
    num_c = pl.num_programs(1)
    TB = x_ref.shape[0]
    Bb, Hp = h_s.shape
    Tc = TB // Bb

    @pl.when(c == 0)
    def _():
        h_s[...] = jnp.zeros_like(h_s)          # PyTorch default h0 = 0

    # Fused input projection: ONE (Tc*Bb, I) @ (I, 3Hp) matmul per chunk.
    # r/z biases are pre-folded (b_ir+b_hr, b_iz+b_hz); n gets b_in here,
    # b_hn stays separate (it must sit inside r * (h@W_hn + b_hn)).
    gi_s[...] = jnp.dot(x_ref[...], w_ih3_ref[...],
                        preferred_element_type=jnp.float32) + b_i3_ref[...]

    b_hn = b_hn_ref[...]                        # (1, Hp) — one vreg, safe to hoist

    def step(t, h):
        base = pl.multiple_of(t * Bb, Bb)       # sublane-aligned row offset
        gi = gi_s[pl.ds(base, Bb), :]           # (Bb, 3Hp)
        # ONE fused recurrent matmul per step; W_hh3 is read from its VMEM ref
        # (not hoisted into vregs) so the register file is not blown at Hp>=128.
        gh = jnp.dot(h, w_hh3_ref[...], preferred_element_type=jnp.float32)
        a_r = gi[:, 0:Hp] + gh[:, 0:Hp]             # lane-aligned static slices
        a_z = gi[:, Hp:2 * Hp] + gh[:, Hp:2 * Hp]
        h_n = gh[:, 2 * Hp:3 * Hp] + b_hn
        # sigmoid(x) = 0.5*(1 + tanh(0.5*x)) -> single EUP pass per gate.
        r = 0.5 * (1.0 + jnp.tanh(0.5 * a_r))
        z = 0.5 * (1.0 + jnp.tanh(0.5 * a_z))
        n = jnp.tanh(gi[:, 2 * Hp:3 * Hp] + r * h_n)
        return (1.0 - z) * n + z * h

    # Bounded unroll: keeps LLO scheduling visibility without the full-unroll
    # instruction/live-range blowup at large Tc.
    h_s[...] = jax.lax.fori_loop(0, Tc, step, h_s[...], unroll=min(8, Tc))

    # Final FC + sigmoid only on the last time chunk of this batch block.
    @pl.when(c == num_c - 1)
    def _():
        logit = jnp.dot(h_s[...], w_fc_ref[...],
                        preferred_element_type=jnp.float32) + b_fc_ref[...]
        logit_ref[...] = logit
        prob_ref[...] = jax.nn.sigmoid(logit)


@functools.partial(jax.jit, static_argnames=("num_batch_blocks", "max_time_chunk"))
def discriminator_forward(x, w_ih, w_hh, b_ih, b_hh, w_fc, b_fc,
                          *, num_batch_blocks=1, max_time_chunk=None):
    """x: (T, B, I) f32.  w_ih: (I, 3H), w_hh: (H, 3H), b_ih/b_hh: (1, 3H),
    w_fc: (H, 1), b_fc: (1, 1).  Returns (y_hat_logit, y_hat), each (B, 1).

    num_batch_blocks: set to 2 on v7x to shard the 'parallel' batch grid axis
    over both TensorCores (harmless-but-serial on single-core chips).
    max_time_chunk:   optional cap on the number of time steps per chunk.
    """
    T, B, I = x.shape
    H = w_hh.shape[0]
    Hp = _round_up(H, 128)      # lane-aligned hidden: gate slices hit vreg bounds

    # ---- batch blocking (leading 'parallel' grid axis) -----------------------
    nb = max(1, int(num_batch_blocks))
    Bb = _round_up(max(8, -(-B // nb)), 8)
    Bp = Bb * nb

    # ---- time chunking: O(Tc) VMEM instead of O(T) ---------------------------
    bytes_per_step = Bb * (3 * Hp + 2 * I) * 4          # gi slab + 2x buffered x
    tc_target = max(1, (16 << 20) // bytes_per_step)    # ~16 MiB chunk budget
    if max_time_chunk is not None:
        tc_target = min(tc_target, int(max_time_chunk))
    Tc = min(T, tc_target)
    while T % Tc:                                       # largest divisor of T
        Tc -= 1
    num_chunks = T // Tc

    # ---- re-layout x to (num_chunks, nb, Tc*Bb, I) (one-time XLA plumbing) ---
    xp = jnp.pad(x, ((0, 0), (0, Bp - B), (0, 0)))              # (T, Bp, I)
    x4 = xp.reshape(num_chunks, Tc, nb, Bb, I).transpose(0, 2, 1, 3, 4)
    x4 = x4.reshape(num_chunks, nb, Tc * Bb, I)

    # ---- weights: fuse the 3 gates into one wide matmul, pad H -> Hp ---------
    def split_pad(w):   # (rows, 3H) -> (rows, 3Hp), per-gate zero pad
        pad = lambda g: jnp.pad(g, ((0, 0), (0, Hp - H)))
        return jnp.concatenate(
            [pad(w[:, 0:H]), pad(w[:, H:2 * H]), pad(w[:, 2 * H:3 * H])], axis=1)

    w_ih3 = split_pad(w_ih)                                     # (I, 3Hp)
    w_hh3 = jnp.pad(split_pad(w_hh), ((0, Hp - H), (0, 0)))     # (Hp, 3Hp)

    b_ih_f, b_hh_f = b_ih.reshape(-1), b_hh.reshape(-1)
    padv = lambda v: jnp.pad(v, (0, Hp - H))
    b_i3 = jnp.concatenate(
        [padv(b_ih_f[0:H] + b_hh_f[0:H]),                       # folded r bias
         padv(b_ih_f[H:2 * H] + b_hh_f[H:2 * H]),               # folded z bias
         padv(b_ih_f[2 * H:3 * H])]).reshape(1, 3 * Hp)         # b_in only
    b_hn = padv(b_hh_f[2 * H:3 * H]).reshape(1, Hp)             # stays separate
    w_fc_p = jnp.pad(w_fc, ((0, Hp - H), (0, 0)))               # (Hp, 1)

    # ---- explicit VMEM budget (keeps the same config inside v7x's 64 MiB) ----
    need = 4 * (2 * Tc * Bb * I                                  # x (2x buffered)
                + 2 * (I * 3 * Hp + Hp * 3 * Hp + 4 * Hp + 3 * Hp + 1)  # weights
                + 8 * Bb                                         # outputs
                + Tc * Bb * 3 * Hp + Bb * Hp)                    # scratch
    vmem_limit = int(min(max(4 * need, 16 << 20), 60 << 20))

    full = lambda shape: pl.BlockSpec(shape, lambda j, c: (0,) * len(shape))

    logit_p, prob_p = pl.pallas_call(
        _gru_disc_kernel,
        grid=(nb, num_chunks),
        out_shape=(jax.ShapeDtypeStruct((Bp, 1), jnp.float32),
                   jax.ShapeDtypeStruct((Bp, 1), jnp.float32)),
        in_specs=[
            pl.BlockSpec((None, None, Tc * Bb, I), lambda j, c: (c, j, 0, 0)),
            full((I, 3 * Hp)),        # w_ih3
            full((Hp, 3 * Hp)),       # w_hh3
            full((1, 3 * Hp)),        # b_i3
            full((1, Hp)),            # b_hn
            full((Hp, 1)),            # w_fc
            full((1, 1)),             # b_fc
        ],
        out_specs=(pl.BlockSpec((Bb, 1), lambda j, c: (j, 0)),
                   pl.BlockSpec((Bb, 1), lambda j, c: (j, 0))),
        scratch_shapes=[pltpu.VMEM((Bb, Hp), jnp.float32),          # h carry
                        pltpu.VMEM((Tc * Bb, 3 * Hp), jnp.float32)],  # gi slab
        compiler_params=pltpu.CompilerParams(
            dimension_semantics=("parallel", "arbitrary"),
            vmem_limit_bytes=vmem_limit),
    )(x4, w_ih3, w_hh3, b_i3, b_hn, w_fc_p, b_fc)

    return logit_p[:B], prob_p[:B]


def reference_forward(x, w_ih, w_hh, b_ih, b_hh, w_fc, b_fc):
    """Pure-JAX reference implementing the same GRU + FC + sigmoid."""
    T, B, I = x.shape
    H = w_hh.shape[0]
    h = jnp.zeros((B, H), jnp.float32)

    def step(h, x_t):
        gi = x_t @ w_ih + b_ih
        gh = h @ w_hh + b_hh
        i_r, i_z, i_n = gi[:, :H], gi[:, H:2 * H], gi[:, 2 * H:]
        h_r, h_z, h_n = gh[:, :H], gh[:, H:2 * H], gh[:, 2 * H:]
        r = jax.nn.sigmoid(i_r + h_r)
        z = jax.nn.sigmoid(i_z + h_z)
        n = jnp.tanh(i_n + r * h_n)
        h_new = (1.0 - z) * n + z * h
        return h_new, None

    h_final, _ = jax.lax.scan(step, h, x)
    logit = h_final @ w_fc + b_fc
    return logit, jax.nn.sigmoid(logit)


if __name__ == "__main__":
    # Small, deterministic setup consistent with the module's forward.
    seq_len, batch, input_size, hidden_size = 8, 20, 16, 32
    key = jax.random.PRNGKey(0)
    ks = jax.random.split(key, 8)

    bound = 1.0 / jnp.sqrt(jnp.float32(hidden_size))
    init = lambda k, shape: jax.random.uniform(
        k, shape, jnp.float32, minval=-bound, maxval=bound)

    # Stored in kernel-friendly (transposed) layout:
    w_ih = init(ks[0], (input_size, 3 * hidden_size))   # PyTorch weight_ih_l0.T
    w_hh = init(ks[1], (hidden_size, 3 * hidden_size))  # PyTorch weight_hh_l0.T
    b_ih = init(ks[2], (1, 3 * hidden_size))
    b_hh = init(ks[3], (1, 3 * hidden_size))
    w_fc = init(ks[4], (hidden_size, 1))                # PyTorch fc.weight.T
    b_fc = init(ks[5], (1, 1))

    x = jax.random.normal(ks[6], (seq_len, batch, input_size), jnp.float32)

    # num_batch_blocks=2 exercises the 'parallel' batch axis (both TCs on v7x);
    # max_time_chunk=4 forces 2 time chunks so the chunked h-carry is exercised.
    logit, prob = discriminator_forward(
        x, w_ih, w_hh, b_ih, b_hh, w_fc, b_fc,
        num_batch_blocks=2, max_time_chunk=4)
    logit, prob = jax.block_until_ready((logit, prob))

    ref_logit, ref_prob = reference_forward(x, w_ih, w_hh, b_ih, b_hh, w_fc, b_fc)
    assert logit.shape == (batch, 1) and prob.shape == (batch, 1)
    assert jnp.allclose(logit, ref_logit, rtol=1e-4, atol=1e-5), \
        float(jnp.max(jnp.abs(logit - ref_logit)))
    assert jnp.allclose(prob, ref_prob, rtol=1e-4, atol=1e-5)

    print("KERNEL_OK")
</pallas_src>

<mosaic_0001>
module attributes {stable_mosaic.version = 11 : i64} {
  func.func @_gru_disc_kernel(%arg0: i32, %arg1: i32, %arg2: memref<1x1x64x16xf32, #tpu.memory_space<vmem>>, %arg3: memref<16x384xf32, #tpu.memory_space<vmem>>, %arg4: memref<128x384xf32, #tpu.memory_space<vmem>>, %arg5: memref<1x384xf32, #tpu.memory_space<vmem>>, %arg6: memref<1x128xf32, #tpu.memory_space<vmem>>, %arg7: memref<128x1xf32, #tpu.memory_space<vmem>>, %arg8: memref<1x1xf32, #tpu.memory_space<vmem>>, %arg9: memref<16x1xf32, #tpu.memory_space<vmem>>, %arg10: memref<16x1xf32, #tpu.memory_space<vmem>>, %arg11: memref<16x128xf32, #tpu.memory_space<vmem>>, %arg12: memref<64x384xf32, #tpu.memory_space<vmem>>) attributes {dimension_semantics = [#tpu.dimension_semantics<parallel>, #tpu.dimension_semantics<arbitrary>], iteration_bounds = array<i64: 2, 2>, scalar_prefetch = 0 : i64, scratch_operands = 2 : i64, tpu.core_type = #tpu.core_type<tc>, window_params = [{transform_indices = @transform_0, window_bounds = array<i64: 1, 1, 64, 16>}, {pipeline_mode = #tpu.pipeline_mode<synchronous>, transform_indices = @transform_1, window_bounds = array<i64: 16, 384>}, {pipeline_mode = #tpu.pipeline_mode<synchronous>, transform_indices = @transform_2, window_bounds = array<i64: 128, 384>}, {pipeline_mode = #tpu.pipeline_mode<synchronous>, transform_indices = @transform_3, window_bounds = array<i64: 1, 384>}, {pipeline_mode = #tpu.pipeline_mode<synchronous>, transform_indices = @transform_4, window_bounds = array<i64: 1, 128>}, {pipeline_mode = #tpu.pipeline_mode<synchronous>, transform_indices = @transform_5, window_bounds = array<i64: 128, 1>}, {pipeline_mode = #tpu.pipeline_mode<synchronous>, transform_indices = @transform_6, window_bounds = array<i64: 1, 1>}, {transform_indices = @transform_7, window_bounds = array<i64: 16, 1>}, {transform_indices = @transform_8, window_bounds = array<i64: 16, 1>}]} {
    %c0_i32 = arith.constant 0 : i32
    %0 = arith.cmpi eq, %arg1, %c0_i32 : i32
    %1 = arith.extui %0 : i1 to i32
    %c0_i32_0 = arith.constant 0 : i32
    %2 = arith.cmpi ne, %1, %c0_i32_0 : i32
    scf.if %2 {
      %cst_66 = arith.constant 0.000000e+00 : f32
      %169 = vector.broadcast %cst_66 : f32 to vector<16x128xf32>
      %c0_67 = arith.constant 0 : index
      %c0_68 = arith.constant 0 : index
      %170 = vector.load %arg11[%c0_67, %c0_68] : memref<16x128xf32, #tpu.memory_space<vmem>>, vector<16x128xf32>
      tpu.vector_store %arg11[%c0_67, %c0_68], %169 {strides = array<i32>} : memref<16x128xf32, #tpu.memory_space<vmem>>, vector<16x128xf32>,
    } else {
    }
    %c0 = arith.constant 0 : index
    %c0_1 = arith.constant 0 : index
    %c0_2 = arith.constant 0 : index
    %c0_3 = arith.constant 0 : index
    %3 = vector.load %arg2[%c0, %c0_1, %c0_2, %c0_3] : memref<1x1x64x16xf32, #tpu.memory_space<vmem>>, vector<1x1x64x16xf32>
    %4 = vector.shape_cast %3 : vector<1x1x64x16xf32> to vector<64x16xf32>
    %c0_4 = arith.constant 0 : index
    %c0_5 = arith.constant 0 : index
    %5 = vector.load %arg3[%c0_4, %c0_5] : memref<16x384xf32, #tpu.memory_space<vmem>>, vector<16x384xf32>
    %cst = arith.constant dense<0.000000e+00> : vector<64x384xf32>
    %6 = tpu.matmul %4, %5, %cst {dimension_numbers = #tpu.dot_dimension_numbers<[1], [0], [0], [1], [0, 0, 1, 1], [], []>} : vector<64x16xf32>, vector<16x384xf32>, vector<64x384xf32> -> vector<64x384xf32>
    %c0_6 = arith.constant 0 : index
    %c0_7 = arith.constant 0 : index
    %7 = vector.load %arg5[%c0_6, %c0_7] : memref<1x384xf32, #tpu.memory_space<vmem>>, vector<1x384xf32>
    %8 = vector.broadcast %7 : vector<1x384xf32> to vector<64x384xf32>
    %9 = arith.addf %6, %8 : vector<64x384xf32>
    %c0_8 = arith.constant 0 : index
    %c0_9 = arith.constant 0 : index
    %10 = vector.load %arg12[%c0_8, %c0_9] : memref<64x384xf32, #tpu.memory_space<vmem>>, vector<64x384xf32>
    tpu.vector_store %arg12[%c0_8, %c0_9], %9 {strides = array<i32>} : memref<64x384xf32, #tpu.memory_space<vmem>>, vector<64x384xf32>,
    %c0_10 = arith.constant 0 : index
    %c0_11 = arith.constant 0 : index
    %11 = vector.load %arg6[%c0_10, %c0_11] : memref<1x128xf32, #tpu.memory_space<vmem>>, vector<1x128xf32>
    %c0_12 = arith.constant 0 : index
    %c0_13 = arith.constant 0 : index
    %12 = vector.load %arg11[%c0_12, %c0_13] : memref<16x128xf32, #tpu.memory_space<vmem>>, vector<16x128xf32>
    %c0_i32_14 = arith.constant 0 : i32
    %c16_i32 = arith.constant 16 : i32
    %13 = arith.muli %c0_i32_14, %c16_i32 : i32
    %14 = tpu.assume_multiple %13, 16 : i32
    %15 = arith.index_cast %14 : i32 to index
    %c0_15 = arith.constant 0 : index
    %16 = vector.load %arg12[%15, %c0_15] : memref<64x384xf32, #tpu.memory_space<vmem>>, vector<16x384xf32>
    %c0_16 = arith.constant 0 : index
    %c0_17 = arith.constant 0 : index
    %17 = vector.load %arg4[%c0_16, %c0_17] : memref<128x384xf32, #tpu.memory_space<vmem>>, vector<128x384xf32>
    %cst_18 = arith.constant dense<0.000000e+00> : vector<16x384xf32>
    %18 = tpu.matmul %12, %17, %cst_18 {dimension_numbers = #tpu.dot_dimension_numbers<[1], [0], [0], [1], [0, 0, 1, 1], [], []>} : vector<16x128xf32>, vector<128x384xf32>, vector<16x384xf32> -> vector<16x384xf32>
    %19 = vector.extract_strided_slice %16 {offsets = [0, 0], sizes = [16, 128], strides = [1, 1]} : vector<16x384xf32> to vector<16x128xf32>
    %20 = vector.extract_strided_slice %18 {offsets = [0, 0], sizes = [16, 128], strides = [1, 1]} : vector<16x384xf32> to vector<16x128xf32>
    %21 = arith.addf %19, %20 : vector<16x128xf32>
    %22 = vector.extract_strided_slice %16 {offsets = [0, 128], sizes = [16, 128], strides = [1, 1]} : vector<16x384xf32> to vector<16x128xf32>
    %23 = vector.extract_strided_slice %18 {offsets = [0, 128], sizes = [16, 128], strides = [1, 1]} : vector<16x384xf32> to vector<16x128xf32>
    %24 = arith.addf %22, %23 : vector<16x128xf32>
    %25 = vector.extract_strided_slice %18 {offsets = [0, 256], sizes = [16, 128], strides = [1, 1]} : vector<16x384xf32> to vector<16x128xf32>
    %26 = vector.broadcast %11 : vector<1x128xf32> to vector<16x128xf32>
    %27 = arith.addf %25, %26 : vector<16x128xf32>
    %cst_19 = arith.constant 5.000000e-01 : f32
    %28 = vector.broadcast %cst_19 : f32 to vector<16x128xf32>
    %29 = arith.mulf %28, %21 : vector<16x128xf32>
    %30 = math.tanh %29 : vector<16x128xf32>
    %cst_20 = arith.constant 1.000000e+00 : f32
    %31 = vector.broadcast %cst_20 : f32 to vector<16x128xf32>
    %32 = arith.addf %31, %30 : vector<16x128xf32>
    %cst_21 = arith.constant 5.000000e-01 : f32
    %33 = vector.broadcast %cst_21 : f32 to vector<16x128xf32>
    %34 = arith.mulf %33, %32 : vector<16x128xf32>
    %cst_22 = arith.constant 5.000000e-01 : f32
    %35 = vector.broadcast %cst_22 : f32 to vector<16x128xf32>
    %36 = arith.mulf %35, %24 : vector<16x128xf32>
    %37 = math.tanh %36 : vector<16x128xf32>
    %cst_23 = arith.constant 1.000000e+00 : f32
    %38 = vector.broadcast %cst_23 : f32 to vector<16x128xf32>
    %39 = arith.addf %38, %37 : vector<16x128xf32>
    %cst_24 = arith.constant 5.000000e-01 : f32
    %40 = vector.broadcast %cst_24 : f32 to vector<16x128xf32>
    %41 = arith.mulf %40, %39 : vector<16x128xf32>
    %42 = vector.extract_strided_slice %16 {offsets = [0, 256], sizes = [16, 128], strides = [1, 1]} : vector<16x384xf32> to vector<16x128xf32>
    %43 = arith.mulf %34, %27 : vector<16x128xf32>
    %44 = arith.addf %42, %43 : vector<16x128xf32>
    %45 = math.tanh %44 : vector<16x128xf32>
    %cst_25 = arith.constant 1.000000e+00 : f32
    %46 = vector.broadcast %cst_25 : f32 to vector<16x128xf32>
    %47 = arith.subf %46, %41 : vector<16x128xf32>
    %48 = arith.mulf %47, %45 : vector<16x128xf32>
    %49 = arith.mulf %41, %12 : vector<16x128xf32>
    %50 = arith.addf %48, %49 : vector<16x128xf32>
    %c1_i32 = arith.constant 1 : i32
    %c16_i32_26 = arith.constant 16 : i32
    %51 = arith.muli %c1_i32, %c16_i32_26 : i32
    %52 = tpu.assume_multiple %51, 16 : i32
    %53 = arith.index_cast %52 : i32 to index
    %c0_27 = arith.constant 0 : index
    %54 = vector.load %arg12[%53, %c0_27] : memref<64x384xf32, #tpu.memory_space<vmem>>, vector<16x384xf32>
    %c0_28 = arith.constant 0 : index
    %c0_29 = arith.constant 0 : index
    %55 = vector.load %arg4[%c0_28, %c0_29] : memref<128x384xf32, #tpu.memory_space<vmem>>, vector<128x384xf32>
    %cst_30 = arith.constant dense<0.000000e+00> : vector<16x384xf32>
    %56 = tpu.matmul %50, %55, %cst_30 {dimension_numbers = #tpu.dot_dimension_numbers<[1], [0], [0], [1], [0, 0, 1, 1], [], []>} : vector<16x128xf32>, vector<128x384xf32>, vector<16x384xf32> -> vector<16x384xf32>
    %57 = vector.extract_strided_slice %54 {offsets = [0, 0], sizes = [16, 128], strides = [1, 1]} : vector<16x384xf32> to vector<16x128xf32>
    %58 = vector.extract_strided_slice %56 {offsets = [0, 0], sizes = [16, 128], strides = [1, 1]} : vector<16x384xf32> to vector<16x128xf32>
    %59 = arith.addf %57, %58 : vector<16x128xf32>
    %60 = vector.extract_strided_slice %54 {offsets = [0, 128], sizes = [16, 128], strides = [1, 1]} : vector<16x384xf32> to vector<16x128xf32>
    %61 = vector.extract_strided_slice %56 {offsets = [0, 128], sizes = [16, 128], strides = [1, 1]} : vector<16x384xf32> to vector<16x128xf32>
    %62 = arith.addf %60, %61 : vector<16x128xf32>
    %63 = vector.extract_strided_slice %56 {offsets = [0, 256], sizes = [16, 128], strides = [1, 1]} : vector<16x384xf32> to vector<16x128xf32>
    %64 = vector.broadcast %11 : vector<1x128xf32> to vector<16x128xf32>
    %65 = arith.addf %63, %64 : vector<16x128xf32>
    %cst_31 = arith.constant 5.000000e-01 : f32
    %66 = vector.broadcast %cst_31 : f32 to vector<16x128xf32>
    %67 = arith.mulf %66, %59 : vector<16x128xf32>
    %68 = math.tanh %67 : vector<16x128xf32>
    %cst_32 = arith.constant 1.000000e+00 : f32
    %69 = vector.broadcast %cst_32 : f32 to vector<16x128xf32>
    %70 = arith.addf %69, %68 : vector<16x128xf32>
    %cst_33 = arith.constant 5.000000e-01 : f32
    %71 = vector.broadcast %cst_33 : f32 to vector<16x128xf32>
    %72 = arith.mulf %71, %70 : vector<16x128xf32>
    %cst_34 = arith.constant 5.000000e-01 : f32
    %73 = vector.broadcast %cst_34 : f32 to vector<16x128xf32>
    %74 = arith.mulf %73, %62 : vector<16x128xf32>
    %75 = math.tanh %74 : vector<16x128xf32>
    %cst_35 = arith.constant 1.000000e+00 : f32
    %76 = vector.broadcast %cst_35 : f32 to vector<16x128xf32>
    %77 = arith.addf %76, %75 : vector<16x128xf32>
    %cst_36 = arith.constant 5.000000e-01 : f32
    %78 = vector.broadcast %cst_36 : f32 to vector<16x128xf32>
    %79 = arith.mulf %78, %77 : vector<16x128xf32>
    %80 = vector.extract_strided_slice %54 {offsets = [0, 256], sizes = [16, 128], strides = [1, 1]} : vector<16x384xf32> to vector<16x128xf32>
    %81 = arith.mulf %72, %65 : vector<16x128xf32>
    %82 = arith.addf %80, %81 : vector<16x128xf32>
    %83 = math.tanh %82 : vector<16x128xf32>
    %cst_37 = arith.constant 1.000000e+00 : f32
    %84 = vector.broadcast %cst_37 : f32 to vector<16x128xf32>
    %85 = arith.subf %84, %79 : vector<16x128xf32>
    %86 = arith.mulf %85, %83 : vector<16x128xf32>
    %87 = arith.mulf %79, %50 : vector<16x128xf32>
    %88 = arith.addf %86, %87 : vector<16x128xf32>
    %c2_i32 = arith.constant 2 : i32
    %c16_i32_38 = arith.constant 16 : i32
    %89 = arith.muli %c2_i32, %c16_i32_38 : i32
    %90 = tpu.assume_multiple %89, 16 : i32
    %91 = arith.index_cast %90 : i32 to index
    %c0_39 = arith.constant 0 : index
    %92 = vector.load %arg12[%91, %c0_39] : memref<64x384xf32, #tpu.memory_space<vmem>>, vector<16x384xf32>
    %c0_40 = arith.constant 0 : index
    %c0_41 = arith.constant 0 : index
    %93 = vector.load %arg4[%c0_40, %c0_41] : memref<128x384xf32, #tpu.memory_space<vmem>>, vector<128x384xf32>
    %cst_42 = arith.constant dense<0.000000e+00> : vector<16x384xf32>
    %94 = tpu.matmul %88, %93, %cst_42 {dimension_numbers = #tpu.dot_dimension_numbers<[1], [0], [0], [1], [0, 0, 1, 1], [], []>} : vector<16x128xf32>, vector<128x384xf32>, vector<16x384xf32> -> vector<16x384xf32>
    %95 = vector.extract_strided_slice %92 {offsets = [0, 0], sizes = [16, 128], strides = [1, 1]} : vector<16x384xf32> to vector<16x128xf32>
    %96 = vector.extract_strided_slice %94 {offsets = [0, 0], sizes = [16, 128], strides = [1, 1]} : vector<16x384xf32> to vector<16x128xf32>
    %97 = arith.addf %95, %96 : vector<16x128xf32>
    %98 = vector.extract_strided_slice %92 {offsets = [0, 128], sizes = [16, 128], strides = [1, 1]} : vector<16x384xf32> to vector<16x128xf32>
    %99 = vector.extract_strided_slice %94 {offsets = [0, 128], sizes = [16, 128], strides = [1, 1]} : vector<16x384xf32> to vector<16x128xf32>
    %100 = arith.addf %98, %99 : vector<16x128xf32>
    %101 = vector.extract_strided_slice %94 {offsets = [0, 256], sizes = [16, 128], strides = [1, 1]} : vector<16x384xf32> to vector<16x128xf32>
    %102 = vector.broadcast %11 : vector<1x128xf32> to vector<16x128xf32>
    %103 = arith.addf %101, %102 : vector<16x128xf32>
    %cst_43 = arith.constant 5.000000e-01 : f32
    %104 = vector.broadcast %cst_43 : f32 to vector<16x128xf32>
    %105 = arith.mulf %104, %97 : vector<16x128xf32>
    %106 = math.tanh %105 : vector<16x128xf32>
    %cst_44 = arith.constant 1.000000e+00 : f32
    %107 = vector.broadcast %cst_44 : f32 to vector<16x128xf32>
    %108 = arith.addf %107, %106 : vector<16x128xf32>
    %cst_45 = arith.constant 5.000000e-01 : f32
    %109 = vector.broadcast %cst_45 : f32 to vector<16x128xf32>
    %110 = arith.mulf %109, %108 : vector<16x128xf32>
    %cst_46 = arith.constant 5.000000e-01 : f32
    %111 = vector.broadcast %cst_46 : f32 to vector<16x128xf32>
    %112 = arith.mulf %111, %100 : vector<16x128xf32>
    %113 = math.tanh %112 : vector<16x128xf32>
    %cst_47 = arith.constant 1.000000e+00 : f32
    %114 = vector.broadcast %cst_47 : f32 to vector<16x128xf32>
    %115 = arith.addf %114, %113 : vector<16x128xf32>
    %cst_48 = arith.constant 5.000000e-01 : f32
    %116 = vector.broadcast %cst_48 : f32 to vector<16x128xf32>
    %117 = arith.mulf %116, %115 : vector<16x128xf32>
    %118 = vector.extract_strided_slice %92 {offsets = [0, 256], sizes = [16, 128], strides = [1, 1]} : vector<16x384xf32> to vector<16x128xf32>
    %119 = arith.mulf %110, %103 : vector<16x128xf32>
    %120 = arith.addf %118, %119 : vector<16x128xf32>
    %121 = math.tanh %120 : vector<16x128xf32>
    %cst_49 = arith.constant 1.000000e+00 : f32
    %122 = vector.broadcast %cst_49 : f32 to vector<16x128xf32>
    %123 = arith.subf %122, %117 : vector<16x128xf32>
    %124 = arith.mulf %123, %121 : vector<16x128xf32>
    %125 = arith.mulf %117, %88 : vector<16x128xf32>
    %126 = arith.addf %124, %125 : vector<16x128xf32>
    %c3_i32 = arith.constant 3 : i32
    %c16_i32_50 = arith.constant 16 : i32
    %127 = arith.muli %c3_i32, %c16_i32_50 : i32
    %128 = tpu.assume_multiple %127, 16 : i32
    %129 = arith.index_cast %128 : i32 to index
    %c0_51 = arith.constant 0 : index
    %130 = vector.load %arg12[%129, %c0_51] : memref<64x384xf32, #tpu.memory_space<vmem>>, vector<16x384xf32>
    %c0_52 = arith.constant 0 : index
    %c0_53 = arith.constant 0 : index
    %131 = vector.load %arg4[%c0_52, %c0_53] : memref<128x384xf32, #tpu.memory_space<vmem>>, vector<128x384xf32>
    %cst_54 = arith.constant dense<0.000000e+00> : vector<16x384xf32>
    %132 = tpu.matmul %126, %131, %cst_54 {dimension_numbers = #tpu.dot_dimension_numbers<[1], [0], [0], [1], [0, 0, 1, 1], [], []>} : vector<16x128xf32>, vector<128x384xf32>, vector<16x384xf32> -> vector<16x384xf32>
    %133 = vector.extract_strided_slice %130 {offsets = [0, 0], sizes = [16, 128], strides = [1, 1]} : vector<16x384xf32> to vector<16x128xf32>
    %134 = vector.extract_strided_slice %132 {offsets = [0, 0], sizes = [16, 128], strides = [1, 1]} : vector<16x384xf32> to vector<16x128xf32>
    %135 = arith.addf %133, %134 : vector<16x128xf32>
    %136 = vector.extract_strided_slice %130 {offsets = [0, 128], sizes = [16, 128], strides = [1, 1]} : vector<16x384xf32> to vector<16x128xf32>
    %137 = vector.extract_strided_slice %132 {offsets = [0, 128], sizes = [16, 128], strides = [1, 1]} : vector<16x384xf32> to vector<16x128xf32>
    %138 = arith.addf %136, %137 : vector<16x128xf32>
    %139 = vector.extract_strided_slice %132 {offsets = [0, 256], sizes = [16, 128], strides = [1, 1]} : vector<16x384xf32> to vector<16x128xf32>
    %140 = vector.broadcast %11 : vector<1x128xf32> to vector<16x128xf32>
    %141 = arith.addf %139, %140 : vector<16x128xf32>
    %cst_55 = arith.constant 5.000000e-01 : f32
    %142 = vector.broadcast %cst_55 : f32 to vector<16x128xf32>
    %143 = arith.mulf %142, %135 : vector<16x128xf32>
    %144 = math.tanh %143 : vector<16x128xf32>
    %cst_56 = arith.constant 1.000000e+00 : f32
    %145 = vector.broadcast %cst_56 : f32 to vector<16x128xf32>
    %146 = arith.addf %145, %144 : vector<16x128xf32>
    %cst_57 = arith.constant 5.000000e-01 : f32
    %147 = vector.broadcast %cst_57 : f32 to vector<16x128xf32>
    %148 = arith.mulf %147, %146 : vector<16x128xf32>
    %cst_58 = arith.constant 5.000000e-01 : f32
    %149 = vector.broadcast %cst_58 : f32 to vector<16x128xf32>
    %150 = arith.mulf %149, %138 : vector<16x128xf32>
    %151 = math.tanh %150 : vector<16x128xf32>
    %cst_59 = arith.constant 1.000000e+00 : f32
    %152 = vector.broadcast %cst_59 : f32 to vector<16x128xf32>
    %153 = arith.addf %152, %151 : vector<16x128xf32>
    %cst_60 = arith.constant 5.000000e-01 : f32
    %154 = vector.broadcast %cst_60 : f32 to vector<16x128xf32>
    %155 = arith.mulf %154, %153 : vector<16x128xf32>
    %156 = vector.extract_strided_slice %130 {offsets = [0, 256], sizes = [16, 128], strides = [1, 1]} : vector<16x384xf32> to vector<16x128xf32>
    %157 = arith.mulf %148, %141 : vector<16x128xf32>
    %158 = arith.addf %156, %157 : vector<16x128xf32>
    %159 = math.tanh %158 : vector<16x128xf32>
    %cst_61 = arith.constant 1.000000e+00 : f32
    %160 = vector.broadcast %cst_61 : f32 to vector<16x128xf32>
    %161 = arith.subf %160, %155 : vector<16x128xf32>
    %162 = arith.mulf %161, %159 : vector<16x128xf32>
    %163 = arith.mulf %155, %126 : vector<16x128xf32>
    %164 = arith.addf %162, %163 : vector<16x128xf32>
    %c4_i32 = arith.constant 4 : i32
    %c0_62 = arith.constant 0 : index
    %c0_63 = arith.constant 0 : index
    %165 = vector.load %arg11[%c0_62, %c0_63] : memref<16x128xf32, #tpu.memory_space<vmem>>, vector<16x128xf32>
    tpu.vector_store %arg11[%c0_62, %c0_63], %164 {strides = array<i32>} : memref<16x128xf32, #tpu.memory_space<vmem>>, vector<16x128xf32>,
    %c1_i32_64 = arith.constant 1 : i32
    %166 = arith.cmpi eq, %arg1, %c1_i32_64 : i32
    %167 = arith.extui %166 : i1 to i32
    %c0_i32_65 = arith.constant 0 : i32
    %168 = arith.cmpi ne, %167, %c0_i32_65 : i32
    scf.if %168 {
      %c0_66 = arith.constant 0 : index
      %c0_67 = arith.constant 0 : index
      %169 = vector.load %arg11[%c0_66, %c0_67] : memref<16x128xf32, #tpu.memory_space<vmem>>, vector<16x128xf32>
      %c0_68 = arith.constant 0 : index
      %c0_69 = arith.constant 0 : index
      %170 = vector.load %arg7[%c0_68, %c0_69] : memref<128x1xf32, #tpu.memory_space<vmem>>, vector<128x1xf32>
      %cst_70 = arith.constant dense<0.000000e+00> : vector<16x1xf32>
      %171 = tpu.matmul %169, %170, %cst_70 {dimension_numbers = #tpu.dot_dimension_numbers<[1], [0], [0], [1], [0, 0, 1, 1], [], []>} : vector<16x128xf32>, vector<128x1xf32>, vector<16x1xf32> -> vector<16x1xf32>
      %c0_71 = arith.constant 0 : index
      %c0_72 = arith.constant 0 : index
      %172 = vector.load %arg8[%c0_71, %c0_72] : memref<1x1xf32, #tpu.memory_space<vmem>>, vector<1x1xf32>
      %173 = vector.broadcast %172 : vector<1x1xf32> to vector<16x1xf32>
      %174 = arith.addf %171, %173 : vector<16x1xf32>
      %c0_73 = arith.constant 0 : index
      %c0_74 = arith.constant 0 : index
      %175 = vector.load %arg9[%c0_73, %c0_74] : memref<16x1xf32, #tpu.memory_space<vmem>>, vector<16x1xf32>
      tpu.vector_store %arg9[%c0_73, %c0_74], %174 {strides = array<i32>} : memref<16x1xf32, #tpu.memory_space<vmem>>, vector<16x1xf32>,
      %176 = arith.negf %174 : vector<16x1xf32>
      %177 = math.exp %176 : vector<16x1xf32>
      %cst_75 = arith.constant 1.000000e+00 : f32
      %178 = vector.broadcast %cst_75 : f32 to vector<16x1xf32>
      %179 = arith.addf %178, %177 : vector<16x1xf32>
      %180 = arith.divf %178, %179 : vector<16x1xf32>
      %c0_76 = arith.constant 0 : index
      %c0_77 = arith.constant 0 : index
      %181 = vector.load %arg10[%c0_76, %c0_77] : memref<16x1xf32, #tpu.memory_space<vmem>>, vector<16x1xf32>
      tpu.vector_store %arg10[%c0_76, %c0_77], %180 {strides = array<i32>} : memref<16x1xf32, #tpu.memory_space<vmem>>, vector<16x1xf32>,
    } else {
    }
    return
  }
  func.func @transform_0(%arg0: i32, %arg1: i32) -> (i32, i32, i32, i32) {
    %c0_i32 = arith.constant 0 : i32
    %c0_i32_0 = arith.constant 0 : i32
    %c0_i32_1 = arith.constant 0 : i32
    return %arg1, %arg0, %c0_i32, %c0_i32_0 : i32, i32, i32, i32
  }
  func.func @transform_1(%arg0: i32, %arg1: i32) -> (i32, i32) {
    %c0_i32 = arith.constant 0 : i32
    %c0_i32_0 = arith.constant 0 : i32
    %c0_i32_1 = arith.constant 0 : i32
    return %c0_i32, %c0_i32_0 : i32, i32
  }
  func.func @transform_2(%arg0: i32, %arg1: i32) -> (i32, i32) {
    %c0_i32 = arith.constant 0 : i32
    %c0_i32_0 = arith.constant 0 : i32
    %c0_i32_1 = arith.constant 0 : i32
    return %c0_i32, %c0_i32_0 : i32, i32
  }
  func.func @transform_3(%arg0: i32, %arg1: i32) -> (i32, i32) {
    %c0_i32 = arith.constant 0 : i32
    %c0_i32_0 = arith.constant 0 : i32
    %c0_i32_1 = arith.constant 0 : i32
    return %c0_i32, %c0_i32_0 : i32, i32
  }
  func.func @transform_4(%arg0: i32, %arg1: i32) -> (i32, i32) {
    %c0_i32 = arith.constant 0 : i32
    %c0_i32_0 = arith.constant 0 : i32
    %c0_i32_1 = arith.constant 0 : i32
    return %c0_i32, %c0_i32_0 : i32, i32
  }
  func.func @transform_5(%arg0: i32, %arg1: i32) -> (i32, i32) {
    %c0_i32 = arith.constant 0 : i32
    %c0_i32_0 = arith.constant 0 : i32
    %c0_i32_1 = arith.constant 0 : i32
    return %c0_i32, %c0_i32_0 : i32, i32
  }
  func.func @transform_6(%arg0: i32, %arg1: i32) -> (i32, i32) {
    %c0_i32 = arith.constant 0 : i32
    %c0_i32_0 = arith.constant 0 : i32
    %c0_i32_1 = arith.constant 0 : i32
    return %c0_i32, %c0_i32_0 : i32, i32
  }
  func.func @transform_7(%arg0: i32, %arg1: i32) -> (i32, i32) {
    %c0_i32 = arith.constant 0 : i32
    %c0_i32_0 = arith.constant 0 : i32
    return %arg0, %c0_i32 : i32, i32
  }
  func.func @transform_8(%arg0: i32, %arg1: i32) -> (i32, i32) {
    %c0_i32 = arith.constant 0 : i32
    %c0_i32_0 = arith.constant 0 : i32
    return %arg0, %c0_i32 : i32, i32
  }
}

</mosaic_0001>

<llo_original>
// kernel: discriminator_forward.1
$region0: #{discriminator_forward.1}
  #allocation0 [shape = 'u32[]', space=smem, size = 0x4, offset = 0x4, fixed_abs, tag = 'smem constant byte address 0x4 - core index']
  #allocation1 [shape = 'u32[144,128]{1,0:T(1,128)}', space=vmem, size = 0x12000, scoped, tag = 'internal scratch']
  #allocation2 [shape = 'f32[16,128]{1,0:T(8,128)}', space=vmem, size = 0x2000, scoped, tag = 'scratch operand']
  #allocation3 [shape = 'f32[64,384]{1,0:T(8,128)}', space=vmem, size = 0x18000, scoped, tag = 'scratch operand']
  #allocation4 [shape = 'f32[1,1]{1,0:T(1,128)S(1)}', space=vmem, size = 0x200, scoped, tag = 'scoped memory for discriminator_forward.1']
  %s0 = inlined_call_operand.vmem [shape: f32[2,2,64,16], index: 0, kind: input, shape index: {}]
  %s1 = inlined_call_operand.vmem [shape: f32[16,384], index: 1, kind: input, shape index: {}]
  %s2 = inlined_call_operand.vmem [shape: f32[128,384], index: 2, kind: input, shape index: {}]
  %s3 = inlined_call_operand.vmem [shape: f32[1,384], index: 3, kind: input, shape index: {}]
  %s4 = inlined_call_operand.vmem [shape: f32[1,128], index: 4, kind: input, shape index: {}]
  %s5 = inlined_call_operand.vmem [shape: f32[128,1], index: 5, kind: input, shape index: {}]
  %s6 = inlined_call_operand.<no memory space> [shape: f32[1,1], index: 6, kind: input, shape index: {}]
  %s7 = inlined_call_operand.vmem [shape: f32[32,1], index: 7, kind: output, shape index: {0}]
  %s8 = inlined_call_operand.vmem [shape: f32[32,1], index: 8, kind: output, shape index: {1}]
  %9 = xla_tuple %s7, %s8
  %s10 = sld [smem:[#allocation0]]
  $region77: #{discriminator_forward.1} parent=0
    _
  %s12 = ssub.s32 1, %s10
  %s13 = scalar_select 0, %s12, %s10
  %v14 = vstv %s6
  %15 = vst [vmem:[#allocation4] sm:$0x1] %v14
  loop: start=0, step=1, limit=6
  $region2: #{discriminator_forward.1} parent=0 // loop_pre_header
    _
  $region3: #{discriminator_forward.1} parent=0 // loop_header
    %s17 = sphi 0, %s21
    %p18 = scmp.ge.s32.totalorder %s17, 6
    %s24 = sphi 0, %s36
    %s25 = sphi 0, %s32
    %s26 = sphi 0, %s24
    %s27 = sphi 0, %s25
    %s28 = sphi 0, %s26
    %s29 = sphi 0, %s27
    %s41 = sphi 0, %s43
    %s44 = sphi 0, %s41
    %s45 = sphi 0, %s44
    %s61 = sphi 0, %s45
    %s65 = sphi 0, %s65
    %s67 = sphi 0, %s65
    %s68 = sphi 0, %s67
    %s82 = sphi 0, %s68
    %s86 = sphi 0, %s86
    %s88 = sphi 0, %s86
    %s89 = sphi 0, %s88
    %s103 = sphi 0, %s89
    %s107 = sphi 0, %s107
    %s109 = sphi 0, %s107
    %s110 = sphi 0, %s109
    %s124 = sphi 0, %s110
    %s128 = sphi 0, %s128
    %s130 = sphi 0, %s128
    %s131 = sphi 0, %s130
    %s145 = sphi 0, %s131
    %s149 = sphi 0, %s149
    %s151 = sphi 0, %s149
    %s152 = sphi 0, %s151
    %s166 = sphi 0, %s152
    %s170 = sphi 0, %s170
    %s172 = sphi 0, %s170
    %s173 = sphi 0, %s172
    %s187 = sphi 0, %s173
    %s193 = sphi 0, %s195
    %s196 = sphi 0, %s193
    %s197 = sphi 0, %s196
    %s213 = sphi 0, %s197
    %s219 = sphi 0, %s221
    %s222 = sphi 0, %s219
    %s223 = sphi 0, %s222
    %s239 = sphi 0, %s223
  $region4: #{discriminator_forward.1} parent=0 // loop_header_branch
    %20 = sbr.rel (%p18) target = $region8
  $region5: #{discriminator_forward.1} parent=0 // loop_body
    %s22 = ssub.s32 %s17, 1
    %s23 = ssub.s32 %s17, 2
    %s30 = sadd.s32 1, %s25
    %p31 = scmp.ge.s32.totalorder %s30, 2
    %s32 = scalar_select %p31, 0, %s30
    %s33 = sadd.s32 1, %s24
    %s34 = scalar_select %p31, %s33, %s24
    %p35 = scmp.ge.s32.totalorder %s34, 2
    %s36 = scalar_select %p35, 0, %s34
    %s37 = ssub.s32 %s25, %s32
    %s38 = ssub.s32 %s24, %s36
    %s39 = sor.u32 %s37, %s38
    %p40 = scmp.eq.s32.totalorder %s39, 0
    %s42 = sadd.s32 %s41, 1
    %s43 = scalar_select %p40, %s41, %s42
    %p46 = pneg %p40
    %p47 = scmp.eq.s32.totalorder %s17, 3
    %p48 = por %p46, %p47
    %p49 = scmp.ne.s32.totalorder %s41, %s44
    %p50 = scmp.eq.s32.totalorder %s17, 0
    %p51 = por %p49, %p50
    %p52 = scmp.ne.s32.totalorder %s41, %s44
    %p53 = scmp.eq.s32.totalorder %s22, 3
    %p54 = por %p52, %p53
    %p55 = scmp.ne.s32.totalorder %s44, %s45
    %p56 = scmp.eq.s32.totalorder %s22, 0
    %p57 = por %p55, %p56
    %p58 = scmp.ne.s32.totalorder %s44, %s45
    %p59 = scmp.eq.s32.totalorder %s23, 3
    %p60 = por %p58, %p59
    %p62 = scmp.ne.s32.totalorder %s45, %s61
    %p63 = scmp.eq.s32.totalorder %s23, 0
    %p64 = por %p62, %p63
    %s66 = sadd.s32 %s65, 1
    %p69 = scmp.eq.s32.totalorder %s17, 3
    %p70 = scmp.ne.s32.totalorder %s65, %s67
    %p71 = scmp.eq.s32.totalorder %s17, 0
    %p72 = por %p70, %p71
    %p73 = scmp.ne.s32.totalorder %s65, %s67
    %p74 = scmp.eq.s32.totalorder %s22, 3
    %p75 = por %p73, %p74
    %p76 = scmp.ne.s32.totalorder %s67, %s68
    %p77 = scmp.eq.s32.totalorder %s22, 0
    %p78 = por %p76, %p77
    %p79 = scmp.ne.s32.totalorder %s67, %s68
    %p80 = scmp.eq.s32.totalorder %s23, 3
    %p81 = por %p79, %p80
    %p83 = scmp.ne.s32.totalorder %s68, %s82
    %p84 = scmp.eq.s32.totalorder %s23, 0
    %p85 = por %p83, %p84
    %s87 = sadd.s32 %s86, 1
    %p90 = scmp.eq.s32.totalorder %s17, 3
    %p91 = scmp.ne.s32.totalorder %s86, %s88
    %p92 = scmp.eq.s32.totalorder %s17, 0
    %p93 = por %p91, %p92
    %p94 = scmp.ne.s32.totalorder %s86, %s88
    %p95 = scmp.eq.s32.totalorder %s22, 3
    %p96 = por %p94, %p95
    %p97 = scmp.ne.s32.totalorder %s88, %s89
    %p98 = scmp.eq.s32.totalorder %s22, 0
    %p99 = por %p97, %p98
    %p100 = scmp.ne.s32.totalorder %s88, %s89
    %p101 = scmp.eq.s32.totalorder %s23, 3
    %p102 = por %p100, %p101
    %p104 = scmp.ne.s32.totalorder %s89, %s103
    %p105 = scmp.eq.s32.totalorder %s23, 0
    %p106 = por %p104, %p105
    %s108 = sadd.s32 %s107, 1
    %p111 = scmp.eq.s32.totalorder %s17, 3
    %p112 = scmp.ne.s32.totalorder %s107, %s109
    %p113 = scmp.eq.s32.totalorder %s17, 0
    %p114 = por %p112, %p113
    %p115 = scmp.ne.s32.totalorder %s107, %s109
    %p116 = scmp.eq.s32.totalorder %s22, 3
    %p117 = por %p115, %p116
    %p118 = scmp.ne.s32.totalorder %s109, %s110
    %p119 = scmp.eq.s32.totalorder %s22, 0
    %p120 = por %p118, %p119
    %p121 = scmp.ne.s32.totalorder %s109, %s110
    %p122 = scmp.eq.s32.totalorder %s23, 3
    %p123 = por %p121, %p122
    %p125 = scmp.ne.s32.totalorder %s110, %s124
    %p126 = scmp.eq.s32.totalorder %s23, 0
    %p127 = por %p125, %p126
    %s129 = sadd.s32 %s128, 1
    %p132 = scmp.eq.s32.totalorder %s17, 3
    %p133 = scmp.ne.s32.totalorder %s128, %s130
    %p134 = scmp.eq.s32.totalorder %s17, 0
    %p135 = por %p133, %p134
    %p136 = scmp.ne.s32.totalorder %s128, %s130
    %p137 = scmp.eq.s32.totalorder %s22, 3
    %p138 = por %p136, %p137
    %p139 = scmp.ne.s32.totalorder %s130, %s131
    %p140 = scmp.eq.s32.totalorder %s22, 0
    %p141 = por %p139, %p140
    %p142 = scmp.ne.s32.totalorder %s130, %s131
    %p143 = scmp.eq.s32.totalorder %s23, 3
    %p144 = por %p142, %p143
    %p146 = scmp.ne.s32.totalorder %s131, %s145
    %p147 = scmp.eq.s32.totalorder %s23, 0
    %p148 = por %p146, %p147
    %s150 = sadd.s32 %s149, 1
    %p153 = scmp.eq.s32.totalorder %s17, 3
    %p154 = scmp.ne.s32.totalorder %s149, %s151
    %p155 = scmp.eq.s32.totalorder %s17, 0
    %p156 = por %p154, %p155
    %p157 = scmp.ne.s32.totalorder %s149, %s151
    %p158 = scmp.eq.s32.totalorder %s22, 3
    %p159 = por %p157, %p158
    %p160 = scmp.ne.s32.totalorder %s151, %s152
    %p161 = scmp.eq.s32.totalorder %s22, 0
    %p162 = por %p160, %p161
    %p163 = scmp.ne.s32.totalorder %s151, %s152
    %p164 = scmp.eq.s32.totalorder %s23, 3
    %p165 = por %p163, %p164
    %p167 = scmp.ne.s32.totalorder %s152, %s166
    %p168 = scmp.eq.s32.totalorder %s23, 0
    %p169 = por %p167, %p168
    %s171 = sadd.s32 %s170, 1
    %p174 = scmp.eq.s32.totalorder %s17, 3
    %p175 = scmp.ne.s32.totalorder %s170, %s172
    %p176 = scmp.eq.s32.totalorder %s17, 0
    %p177 = por %p175, %p176
    %p178 = scmp.ne.s32.totalorder %s170, %s172
    %p179 = scmp.eq.s32.totalorder %s22, 3
    %p180 = por %p178, %p179
    %p181 = scmp.ne.s32.totalorder %s172, %s173
    %p182 = scmp.eq.s32.totalorder %s22, 0
    %p183 = por %p181, %p182
    %p184 = scmp.ne.s32.totalorder %s172, %s173
    %p185 = scmp.eq.s32.totalorder %s23, 3
    %p186 = por %p184, %p185
    %p188 = scmp.ne.s32.totalorder %s173, %s187
    %p189 = scmp.eq.s32.totalorder %s23, 0
    %p190 = por %p188, %p189
    %s191 = ssub.s32 %s24, %s36
    %p192 = scmp.eq.s32.totalorder %s191, 0
    %s194 = sadd.s32 %s193, 1
    %s195 = scalar_select %p192, %s193, %s194
    %p198 = pneg %p192
    %p199 = scmp.eq.s32.totalorder %s17, 3
    %p200 = por %p198, %p199
    %p201 = scmp.ne.s32.totalorder %s193, %s196
    %p202 = scmp.eq.s32.totalorder %s17, 0
    %p203 = por %p201, %p202
    %p204 = scmp.ne.s32.totalorder %s193, %s196
    %p205 = scmp.eq.s32.totalorder %s22, 3
    %p206 = por %p204, %p205
    %p207 = scmp.ne.s32.totalorder %s196, %s197
    %p208 = scmp.eq.s32.totalorder %s22, 0
    %p209 = por %p207, %p208
    %p210 = scmp.ne.s32.totalorder %s196, %s197
    %p211 = scmp.eq.s32.totalorder %s23, 3
    %p212 = por %p210, %p211
    %p214 = scmp.ne.s32.totalorder %s197, %s213
    %p215 = scmp.eq.s32.totalorder %s23, 0
    %p216 = por %p214, %p215
    %s217 = ssub.s32 %s24, %s36
    %p218 = scmp.eq.s32.totalorder %s217, 0
    %s220 = sadd.s32 %s219, 1
    %s221 = scalar_select %p218, %s219, %s220
    %p224 = pneg %p218
    %p225 = scmp.eq.s32.totalorder %s17, 3
    %p226 = por %p224, %p225
    %p227 = scmp.ne.s32.totalorder %s219, %s222
    %p228 = scmp.eq.s32.totalorder %s17, 0
    %p229 = por %p227, %p228
    %p230 = scmp.ne.s32.totalorder %s219, %s222
    %p231 = scmp.eq.s32.totalorder %s22, 3
    %p232 = por %p230, %p231
    %p233 = scmp.ne.s32.totalorder %s222, %s223
    %p234 = scmp.eq.s32.totalorder %s22, 0
    %p235 = por %p233, %p234
    %p236 = scmp.ne.s32.totalorder %s222, %s223
    %p237 = scmp.eq.s32.totalorder %s23, 3
    %p238 = por %p236, %p237
    %p240 = scmp.ne.s32.totalorder %s223, %s239
    %p241 = scmp.eq.s32.totalorder %s23, 0
    %p242 = por %p240, %p241
    %p243 = scmp.le.s32.totalorder 1, %s17
    %p244 = scmp.lt.s32.totalorder %s17, 5
    %p245 = pnand %p243, %p244
    %p246 = pneg %p245
    // Predicated region
    $region9: #{discriminator_forward.1} parent=5 // pred_check
      _
    $region10: #{discriminator_forward.1} parent=5 // pred_check_branch
      %248 = sbr.rel (%p245) target = $region12
    $region11: #{discriminator_forward.1} parent=5 // pred_region
      %s249 = ssub.s32 %s17, 1
      // Predicated region
      $region13: #{discriminator_forward.1} parent=11 // pred_check
        %p250 = pneg %p78
      $region14: #{discriminator_forward.1} parent=11 // pred_check_branch
        %252 = sbr.rel (%p250) target = $region16
      $region15: #{discriminator_forward.1} parent=11 // pred_region
        _
      $region16: #{discriminator_forward.1} parent=11 // pred_fallthru
        _
      // Predicated region
      $region17: #{discriminator_forward.1} parent=11 // pred_check
        %p253 = pneg %p99
      $region18: #{discriminator_forward.1} parent=11 // pred_check_branch
        %255 = sbr.rel (%p253) target = $region20
      $region19: #{discriminator_forward.1} parent=11 // pred_region
        _
      $region20: #{discriminator_forward.1} parent=11 // pred_fallthru
        _
      // Predicated region
      $region21: #{discriminator_forward.1} parent=11 // pred_check
        %p256 = pneg %p120
      $region22: #{discriminator_forward.1} parent=11 // pred_check_branch
        %258 = sbr.rel (%p256) target = $region24
      $region23: #{discriminator_forward.1} parent=11 // pred_region
        _
      $region24: #{discriminator_forward.1} parent=11 // pred_fallthru
        _
      // Predicated region
      $region25: #{discriminator_forward.1} parent=11 // pred_check
        %p259 = pneg %p141
      $region26: #{discriminator_forward.1} parent=11 // pred_check_branch
        %261 = sbr.rel (%p259) target = $region28
      $region27: #{discriminator_forward.1} parent=11 // pred_region
        _
      $region28: #{discriminator_forward.1} parent=11 // pred_fallthru
        _
      // Predicated region
      $region29: #{discriminator_forward.1} parent=11 // pred_check
        %p262 = pneg %p162
      $region30: #{discriminator_forward.1} parent=11 // pred_check_branch
        %264 = sbr.rel (%p262) target = $region32
      $region31: #{discriminator_forward.1} parent=11 // pred_region
        _
      $region32: #{discriminator_forward.1} parent=11 // pred_fallthru
        _
      // Predicated region
      $region33: #{discriminator_forward.1} parent=11 // pred_check
        %p265 = pneg %p183
      $region34: #{discriminator_forward.1} parent=11 // pred_check_branch
        %267 = sbr.rel (%p265) target = $region36
      $region35: #{discriminator_forward.1} parent=11 // pred_region
        _
      $region36: #{discriminator_forward.1} parent=11 // pred_fallthru
        _
    $region12: #{discriminator_forward.1} parent=5 // pred_fallthru
      _
    %p268 = scmp.lt.s32.totalorder %s17, 4
    // Predicated region
    $region37: #{discriminator_forward.1} parent=5 // pred_check
      %p269 = pneg %p268
    $region38: #{discriminator_forward.1} parent=5 // pred_check_branch
      %271 = sbr.rel (%p269) target = $region40
    $region39: #{discriminator_forward.1} parent=5 // pred_region
      // Predicated region
      $region41: #{discriminator_forward.1} parent=39 // pred_check
        %p272 = pneg %p51
      $region42: #{discriminator_forward.1} parent=39 // pred_check_branch
        %274 = sbr.rel (%p272) target = $region44
      $region43: #{discriminator_forward.1} parent=39 // pred_region
        %p275 = scmp.lt.s32.totalorder %s25, 1
        %s276 = scalar_select %p275, %s25, 1
        %p277 = scmp.lt.s32.totalorder %s24, 1
        %s278 = scalar_select %p277, %s24, 1
        %s279 = smul.addr %s278, 8
        %s280 = smul.addr %s276, 16
        %s281 = sadd.s32 %s279, %s280
        %s282 = smul.addr %s281, 8
        %s283 = scalar_lea.vmem %s0, %s282
      $region44: #{discriminator_forward.1} parent=39 // pred_fallthru
        _
    $region40: #{discriminator_forward.1} parent=5 // pred_fallthru
      _
    %p284 = scmp.le.s32.totalorder 1, %s17
    %p285 = scmp.lt.s32.totalorder %s17, 5
    %p286 = pnand %p284, %p285
    %p287 = pneg %p286
    // Predicated region
    $region45: #{discriminator_forward.1} parent=5 // pred_check
      _
    $region46: #{discriminator_forward.1} parent=5 // pred_check_branch
      %289 = sbr.rel (%p286) target = $region48
    $region47: #{discriminator_forward.1} parent=5 // pred_region
      %s290 = ssub.s32 %s17, 1
      %p291 = scmp.lt.s32.totalorder %s27, 1
      %s292 = scalar_select %p291, %s27, 1
      %p293 = scmp.lt.s32.totalorder %s26, 1
      %s294 = scalar_select %p293, %s26, 1
      %s295 = smul.addr %s294, 8
      %s296 = smul.addr %s292, 16
      %s297 = sadd.s32 %s295, %s296
      %s298 = smul.addr %s297, 8
      %s299 = scalar_lea.vmem %s0, %s298
      %p300 = pneg %p57
      %p301 = pneg %p54
      %p302 = pneg %p78
      %p303 = pneg %p75
      %p304 = pneg %p99
      %p305 = pneg %p96
      %p306 = pneg %p120
      %p307 = pneg %p117
      %p308 = pneg %p141
      %p309 = pneg %p138
      %p310 = pneg %p162
      %p311 = pneg %p159
      %p312 = pneg %p183
      %p313 = pneg %p180
      %p314 = pneg %p209
      %p315 = pneg %p206
      %s316 = smul.u32 2, %s26
      %p317 = scmp.lt.s32.totalorder %s316, 3
      %s318 = scalar_select %p317, %s316, 3
      %s319 = smul.addr %s318, 8
      %s320 = scalar_lea.vmem %s7, %s319
      %p321 = pneg %p235
      %p322 = pneg %p232
      %s323 = smul.u32 2, %s26
      %p324 = scmp.lt.s32.totalorder %s323, 3
      %s325 = scalar_select %p324, %s323, 3
      %s326 = smul.addr %s325, 8
      %s327 = scalar_lea.vmem %s8, %s326
      %p328 = scmp.lt.s32.totalorder %s27, 1
      %s329 = scalar_select %p328, %s27, 1
      %p330 = scmp.lt.s32.totalorder %s26, 1
      %s331 = scalar_select %p330, %s26, 1
      %s332 = smul.addr %s331, 8
      %s333 = smul.addr %s329, 16
      %s334 = sadd.s32 %s332, %s333
      %s335 = smul.addr %s334, 8
      %s336 = scalar_lea.vmem %s0, %s335
      %s337 = smul.u32 2, %s26
      %p338 = scmp.lt.s32.totalorder %s337, 3
      %s339 = scalar_select %p338, %s337, 3
      %s340 = smul.addr %s339, 8
      %s341 = scalar_lea.vmem %s7, %s340
      %s342 = smul.u32 2, %s26
      %s343 = smul.u32 2, %s26
      %p344 = scmp.lt.s32.totalorder %s343, 3
      %s345 = scalar_select %p344, %s343, 3
      %s346 = smul.addr %s345, 8
      %s347 = scalar_lea.vmem %s8, %s346
      %s348 = smul.u32 2, %s26
      %p349 = scmp.eq.s32.totalorder %s27, 0
      // Predicated region
      $region49: #{discriminator_forward.1} parent=47 // pred_check
        %p350 = pneg %p349
      $region50: #{discriminator_forward.1} parent=47 // pred_check_branch
        %352 = sbr.rel (%p350) target = $region52
      $region51: #{discriminator_forward.1} parent=47 // pred_region
        %353 = vst [vmem:[#allocation2] sm:$0xff] 0.0
        %354 = vst [vmem:[#allocation2 + $0x8] sm:$0xff] 0.0
      $region52: #{discriminator_forward.1} parent=47 // pred_fallthru
        _
      %v355 = vld [vmem:[%s336] sm:$0xff]
      %v356 = vld [vmem:[%s336 + $0x8] sm:$0xff]
      %v357 = vld [vmem:[%s336 + $0x10] sm:$0xff]
      %v358 = vld [vmem:[%s336 + $0x18] sm:$0xff]
      %v359 = vld [vmem:[%s336 + $0x20] sm:$0xff]
      %v360 = vld [vmem:[%s336 + $0x28] sm:$0xff]
      %v361 = vld [vmem:[%s336 + $0x30] sm:$0xff]
      %v362 = vld [vmem:[%s336 + $0x38] sm:$0xff]
      %v363 = vld [vmem:[%s1] sm:$0xff]
      %v364 = vld [vmem:[%s1 + $0x8] sm:$0xff]
      %v365 = vld [vmem:[%s1 + $0x10] sm:$0xff]
      %v366 = vld [vmem:[%s1 + $0x18] sm:$0xff]
      %v367 = vld [vmem:[%s1 + $0x20] sm:$0xff]
      %v368 = vld [vmem:[%s1 + $0x28] sm:$0xff]
      %v369 = vld [vmem:[%s3] sm:$0x7]
      %v371 = vlaneseq
      %v372 = vshrl.u32 %v371, 7
      %v373 = vsub.s32 0, %v372
      %v374 = vrot.slane %v369, %v373
      %v375 = vlaneseq
      %v376 = vshrl.u32 %v375, 7
      %v377 = vsub.s32 1, %v376
      %v378 = vrot.slane %v369, %v377
      %v379 = vlaneseq
      %v380 = vshrl.u32 %v379, 7
      %v381 = vsub.s32 2, %v380
      %v382 = vrot.slane %v369, %v381
      %vm386 = vcmask 130048
      %v388 = vsel %vm386, %v355, 0
      %v391 = vsel %vm386, %v356, 0
      %v394 = vsel %vm386, %v357, 0
      %v397 = vsel %vm386, %v358, 0
      %v400 = vsel %vm386, %v359, 0
      %v403 = vsel %vm386, %v360, 0
      %v406 = vsel %vm386, %v361, 0
      %v409 = vsel %vm386, %v362, 0
      %411 = vmatprep.subr.mxu0 0.0
      %412 = vmatpush1.msra.mxu0 0.0
      %413 = vmatprep.subr.mxu0 0.0
      %414 = vmatpush1.msra.mxu0 0.0
      %415 = vmatprep.subr.mxu0 0.0
      %416 = vmatpush1.msra.mxu0 0.0
      %417 = vmatprep.subr.mxu0 0.0
      %418 = vmatpush1.msra.mxu0 0.0
      %419 = vmatprep.subr.mxu0 0.0
      %420 = vmatpush1.msra.mxu0 0.0
      %421 = vmatprep.subr.mxu0 0.0
      %422 = vmatpush1.msra.mxu0 0.0
      %423 = vmatprep.subr.mxu0 0.0
      %424 = vmatpush1.msra.mxu0 0.0
      %425 = vmatprep.subr.mxu0 0.0
      %426 = vmatpush1.msra.mxu0 0.0
      %427 = vmatprep.subr.mxu0 0.0
      %428 = vmatpush1.msra.mxu0 0.0
      %429 = vmatprep.subr.mxu0 0.0
      %430 = vmatpush1.msra.mxu0 0.0
      %431 = vmatprep.subr.mxu0 0.0
      %432 = vmatpush1.msra.mxu0 0.0
      %433 = vmatprep.subr.mxu0 0.0
      %434 = vmatpush1.msra.mxu0 0.0
      %435 = vmatprep.subr.mxu0 0.0
      %436 = vmatpush1.msra.mxu0 0.0
      %437 = vmatprep.subr.mxu0 0.0
      %438 = vmatpush1.msra.mxu0 0.0
      %439 = vmatprep.subr.mxu0 %v367
      %440 = vmatpush1.msra.mxu0 %v366
      %441 = vmatprep.subr.mxu0 %v364
      %442 = vmatpush1.msra.mxu0 %v363
      %443 = vmatprep.subr.mxu0 0.0
      %444 = vmatpush2.msra.mxu0 0.0
      %445 = vmatprep.subr.mxu0 0.0
      %446 = vmatpush2.msra.mxu0 0.0
      %447 = vmatprep.subr.mxu0 0.0
      %448 = vmatpush2.msra.mxu0 0.0
      %449 = vmatprep.subr.mxu0 0.0
      %450 = vmatpush2.msra.mxu0 0.0
      %451 = vmatprep.subr.mxu0 0.0
      %452 = vmatpush2.msra.mxu0 0.0
      %453 = vmatprep.subr.mxu0 0.0
      %454 = vmatpush2.msra.mxu0 0.0
      %455 = vmatprep.subr.mxu0 0.0
      %456 = vmatpush2.msra.mxu0 0.0
      %457 = vmatprep.subr.mxu0 0.0
      %458 = vmatpush2.msra.mxu0 0.0
      %459 = vmatprep.subr.mxu0 0.0
      %460 = vmatpush2.msra.mxu0 0.0
      %461 = vmatprep.subr.mxu0 0.0
      %462 = vmatpush2.msra.mxu0 0.0
      %463 = vmatprep.subr.mxu0 0.0
      %464 = vmatpush2.msra.mxu0 0.0
      %465 = vmatprep.subr.mxu0 0.0
      %466 = vmatpush2.msra.mxu0 0.0
      %467 = vmatprep.subr.mxu0 0.0
      %468 = vmatpush2.msra.mxu0 0.0
      %469 = vmatprep.subr.mxu0 0.0
      %470 = vmatpush2.msra.mxu0 0.0
      %471 = vmatprep.subr.mxu0 0.0
      %472 = vmatpush2.msra.mxu0 0.0
      %473 = vmatprep.subr.mxu0 0.0
      %474 = vmatpush2.msra.mxu0 0.0
      %475 = vmatprep.mubr.f32.mxu0 0.0
      %476 = vmatmul.mubr.f32.gmra.mxu0 %v388
      %v477 = vpop.f32.mrf.mxu0
      %v478 = vadd.f32 %v374, %v477
      %v479 = vpop.f32.mrf.mxu0
      %v480 = vadd.f32 %v378, %v479
      %481 = vmatprep.mubr.f32.mxu0 0.0
      %482 = vmatmul.mubr.f32.gmra.mxu0 %v391
      %v483 = vpop.f32.mrf.mxu0
      %v484 = vadd.f32 %v374, %v483
      %v485 = vpop.f32.mrf.mxu0
      %v486 = vadd.f32 %v378, %v485
      %487 = vmatprep.mubr.f32.mxu0 0.0
      %488 = vmatmul.mubr.f32.gmra.mxu0 %v394
      %v489 = vpop.f32.mrf.mxu0
      %v490 = vadd.f32 %v374, %v489
      %v491 = vpop.f32.mrf.mxu0
      %v492 = vadd.f32 %v378, %v491
      %493 = vmatprep.mubr.f32.mxu0 0.0
      %494 = vmatmul.mubr.f32.gmra.mxu0 %v397
      %v495 = vpop.f32.mrf.mxu0
      %v496 = vadd.f32 %v374, %v495
      %v497 = vpop.f32.mrf.mxu0
      %v498 = vadd.f32 %v378, %v497
      %499 = vmatprep.mubr.f32.mxu0 0.0
      %500 = vmatmul.mubr.f32.gmra.mxu0 %v400
      %v501 = vpop.f32.mrf.mxu0
      %v502 = vadd.f32 %v374, %v501
      %v503 = vpop.f32.mrf.mxu0
      %v504 = vadd.f32 %v378, %v503
      %505 = vmatprep.mubr.f32.mxu0 0.0
      %506 = vmatmul.mubr.f32.gmra.mxu0 %v403
      %v507 = vpop.f32.mrf.mxu0
      %v508 = vadd.f32 %v374, %v507
      %v509 = vpop.f32.mrf.mxu0
      %v510 = vadd.f32 %v378, %v509
      %511 = vmatprep.mubr.f32.mxu0 0.0
      %512 = vmatmul.mubr.f32.gmra.mxu0 %v406
      %v513 = vpop.f32.mrf.mxu0
      %v514 = vadd.f32 %v374, %v513
      %v515 = vpop.f32.mrf.mxu0
      %v516 = vadd.f32 %v378, %v515
      %517 = vmatprep.mubr.f32.mxu0 0.0
      %518 = vmatmul.mubr.f32.gmra.mxu0 %v409
      %v519 = vpop.f32.mrf.mxu0
      %v520 = vadd.f32 %v374, %v519
      %v521 = vpop.f32.mrf.mxu0
      %v522 = vadd.f32 %v378, %v521
      %523 = vdwg.mxu0
      %524 = vmatprep.subr.mxu0 0.0
      %525 = vmatpush1.msra.mxu0 0.0
      %526 = vmatprep.subr.mxu0 0.0
      %527 = vmatpush1.msra.mxu0 0.0
      %528 = vmatprep.subr.mxu0 0.0
      %529 = vmatpush1.msra.mxu0 0.0
      %530 = vmatprep.subr.mxu0 0.0
      %531 = vmatpush1.msra.mxu0 0.0
      %532 = vmatprep.subr.mxu0 0.0
      %533 = vmatpush1.msra.mxu0 0.0
      %534 = vmatprep.subr.mxu0 0.0
      %535 = vmatpush1.msra.mxu0 0.0
      %536 = vmatprep.subr.mxu0 0.0
      %537 = vmatpush1.msra.mxu0 0.0
      %538 = vmatprep.subr.mxu0 0.0
      %539 = vmatpush1.msra.mxu0 0.0
      %540 = vmatprep.subr.mxu0 0.0
      %541 = vmatpush1.msra.mxu0 0.0
      %542 = vmatprep.subr.mxu0 0.0
      %543 = vmatpush1.msra.mxu0 0.0
      %544 = vmatprep.subr.mxu0 0.0
      %545 = vmatpush1.msra.mxu0 0.0
      %546 = vmatprep.subr.mxu0 0.0
      %547 = vmatpush1.msra.mxu0 0.0
      %548 = vmatprep.subr.mxu0 0.0
      %549 = vmatpush1.msra.mxu0 0.0
      %550 = vmatprep.subr.mxu0 0.0
      %551 = vmatpush1.msra.mxu0 0.0
      %552 = vmatprep.subr.mxu0 0.0
      %553 = vmatpush1.msra.mxu0 %v368
      %554 = vmatprep.subr.mxu0 0.0
      %555 = vmatpush1.msra.mxu0 %v365
      %556 = vmatprep.subr.mxu0 0.0
      %557 = vmatpush2.msra.mxu0 0.0
      %558 = vmatprep.subr.mxu0 0.0
      %559 = vmatpush2.msra.mxu0 0.0
      %560 = vmatprep.subr.mxu0 0.0
      %561 = vmatpush2.msra.mxu0 0.0
      %562 = vmatprep.subr.mxu0 0.0
      %563 = vmatpush2.msra.mxu0 0.0
      %564 = vmatprep.subr.mxu0 0.0
      %565 = vmatpush2.msra.mxu0 0.0
      %566 = vmatprep.subr.mxu0 0.0
      %567 = vmatpush2.msra.mxu0 0.0
      %568 = vmatprep.subr.mxu0 0.0
      %569 = vmatpush2.msra.mxu0 0.0
      %570 = vmatprep.subr.mxu0 0.0
      %571 = vmatpush2.msra.mxu0 0.0
      %572 = vmatprep.subr.mxu0 0.0
      %573 = vmatpush2.msra.mxu0 0.0
      %574 = vmatprep.subr.mxu0 0.0
      %575 = vmatpush2.msra.mxu0 0.0
      %576 = vmatprep.subr.mxu0 0.0
      %577 = vmatpush2.msra.mxu0 0.0
      %578 = vmatprep.subr.mxu0 0.0
      %579 = vmatpush2.msra.mxu0 0.0
      %580 = vmatprep.subr.mxu0 0.0
      %581 = vmatpush2.msra.mxu0 0.0
      %582 = vmatprep.subr.mxu0 0.0
      %583 = vmatpush2.msra.mxu0 0.0
      %584 = vmatprep.subr.mxu0 0.0
      %585 = vmatpush2.msra.mxu0 0.0
      %586 = vmatprep.subr.mxu0 0.0
      %587 = vmatpush2.msra.mxu0 0.0
      %588 = vmatprep.mubr.f32.mxu0 0.0
      %589 = vmatmul.mubr.f32.gmra.mxu0 %v388
      %v590 = vpop.f32.mrf.mxu0
      %v591 = vadd.f32 %v382, %v590
      %v592 = vpop.f32.mrf.mxu0
      %593 = vmatprep.mubr.f32.mxu0 0.0
      %594 = vmatmul.mubr.f32.gmra.mxu0 %v391
      %v595 = vpop.f32.mrf.mxu0
      %v596 = vadd.f32 %v382, %v595
      %v597 = vpop.f32.mrf.mxu0
      %598 = vmatprep.mubr.f32.mxu0 0.0
      %599 = vmatmul.mubr.f32.gmra.mxu0 %v394
      %v600 = vpop.f32.mrf.mxu0
      %v601 = vadd.f32 %v382, %v600
      %v602 = vpop.f32.mrf.mxu0
      %603 = vmatprep.mubr.f32.mxu0 0.0
      %604 = vmatmul.mubr.f32.gmra.mxu0 %v397
      %v605 = vpop.f32.mrf.mxu0
      %v606 = vadd.f32 %v382, %v605
      %v607 = vpop.f32.mrf.mxu0
      %608 = vmatprep.mubr.f32.mxu0 0.0
      %609 = vmatmul.mubr.f32.gmra.mxu0 %v400
      %v610 = vpop.f32.mrf.mxu0
      %v611 = vadd.f32 %v382, %v610
      %v612 = vpop.f32.mrf.mxu0
      %613 = vmatprep.mubr.f32.mxu0 0.0
      %614 = vmatmul.mubr.f32.gmra.mxu0 %v403
      %v615 = vpop.f32.mrf.mxu0
      %v616 = vadd.f32 %v382, %v615
      %v617 = vpop.f32.mrf.mxu0
      %618 = vmatprep.mubr.f32.mxu0 0.0
      %619 = vmatmul.mubr.f32.gmra.mxu0 %v406
      %v620 = vpop.f32.mrf.mxu0
      %v621 = vadd.f32 %v382, %v620
      %v622 = vpop.f32.mrf.mxu0
      %623 = vmatprep.mubr.f32.mxu0 0.0
      %624 = vmatmul.mubr.f32.gmra.mxu0 %v409
      %v625 = vpop.f32.mrf.mxu0
      %v626 = vadd.f32 %v382, %v625
      %v627 = vpop.f32.mrf.mxu0
      %628 = vdwg.mxu0
      %629 = vst [vmem:[#allocation3] sm:$0xff] %v478
      %630 = vst [vmem:[#allocation3 + $0x8] sm:$0xff] %v480
      %631 = vst [vmem:[#allocation3 + $0x10] sm:$0xff] %v591
      %632 = vst [vmem:[#allocation3 + $0x18] sm:$0xff] %v484
      %633 = vst [vmem:[#allocation3 + $0x20] sm:$0xff] %v486
      %634 = vst [vmem:[#allocation3 + $0x28] sm:$0xff] %v596
      %635 = vst [vmem:[#allocation3 + $0x30] sm:$0xff] %v490
      %636 = vst [vmem:[#allocation3 + $0x38] sm:$0xff] %v492
      %637 = vst [vmem:[#allocation3 + $0x40] sm:$0xff] %v601
      %638 = vst [vmem:[#allocation3 + $0x48] sm:$0xff] %v496
      %639 = vst [vmem:[#allocation3 + $0x50] sm:$0xff] %v498
      %640 = vst [vmem:[#allocation3 + $0x58] sm:$0xff] %v606
      %641 = vst [vmem:[#allocation3 + $0x60] sm:$0xff] %v502
      %642 = vst [vmem:[#allocation3 + $0x68] sm:$0xff] %v504
      %643 = vst [vmem:[#allocation3 + $0x70] sm:$0xff] %v611
      %644 = vst [vmem:[#allocation3 + $0x78] sm:$0xff] %v508
      %645 = vst [vmem:[#allocation3 + $0x80] sm:$0xff] %v510
      %646 = vst [vmem:[#allocation3 + $0x88] sm:$0xff] %v616
      %647 = vst [vmem:[#allocation3 + $0x90] sm:$0xff] %v514
      %648 = vst [vmem:[#allocation3 + $0x98] sm:$0xff] %v516
      %649 = vst [vmem:[#allocation3 + $0xa0] sm:$0xff] %v621
      %650 = vst [vmem:[#allocation3 + $0xa8] sm:$0xff] %v520
      %651 = vst [vmem:[#allocation3 + $0xb0] sm:$0xff] %v522
      %652 = vst [vmem:[#allocation3 + $0xb8] sm:$0xff] %v626
      %v653 = vld [vmem:[%s4] sm:$0x1]
      %v654 = vld [vmem:[#allocation2] sm:$0xff]
      %v655 = vld [vmem:[#allocation2 + $0x8] sm:$0xff]
      %s656 = smul.u32 0, 3
      %s657 = smul.addr %s656, 8
      %s658 = scalar_lea.vmem [#allocation3], %s657
      %v659 = vld [vmem:[%s658] sm:$0xff]
      %v660 = vld [vmem:[%s658 + $0x8] sm:$0xff]
      %v661 = vld [vmem:[%s658 + $0x10] sm:$0xff]
      %v662 = vld [vmem:[%s658 + $0x18] sm:$0xff]
      %v663 = vld [vmem:[%s658 + $0x20] sm:$0xff]
      %v664 = vld [vmem:[%s658 + $0x28] sm:$0xff]
      %v665 = vld [vmem:[%s2] sm:$0xff]
      %v666 = vld [vmem:[%s2 + $0x8] sm:$0xff]
      %v667 = vld [vmem:[%s2 + $0x10] sm:$0xff]
      %v668 = vld [vmem:[%s2 + $0x18] sm:$0xff]
      %v669 = vld [vmem:[%s2 + $0x20] sm:$0xff]
      %v670 = vld [vmem:[%s2 + $0x28] sm:$0xff]
      %v671 = vld [vmem:[%s2 + $0x30] sm:$0xff]
      %v672 = vld [vmem:[%s2 + $0x38] sm:$0xff]
      %v673 = vld [vmem:[%s2 + $0x40] sm:$0xff]
      %v674 = vld [vmem:[%s2 + $0x48] sm:$0xff]
      %v675 = vld [vmem:[%s2 + $0x50] sm:$0xff]
      %v676 = vld [vmem:[%s2 + $0x58] sm:$0xff]
      %v677 = vld [vmem:[%s2 + $0x60] sm:$0xff]
      %v678 = vld [vmem:[%s2 + $0x68] sm:$0xff]
      %v679 = vld [vmem:[%s2 + $0x70] sm:$0xff]
      %v680 = vld [vmem:[%s2 + $0x78] sm:$0xff]
      %v681 = vld [vmem:[%s2 + $0x80] sm:$0xff]
      %v682 = vld [vmem:[%s2 + $0x88] sm:$0xff]
      %v683 = vld [vmem:[%s2 + $0x90] sm:$0xff]
      %v684 = vld [vmem:[%s2 + $0x98] sm:$0xff]
      %v685 = vld [vmem:[%s2 + $0xa0] sm:$0xff]
      %v686 = vld [vmem:[%s2 + $0xa8] sm:$0xff]
      %v687 = vld [vmem:[%s2 + $0xb0] sm:$0xff]
      %v688 = vld [vmem:[%s2 + $0xb8] sm:$0xff]
      %v689 = vld [vmem:[%s2 + $0xc0] sm:$0xff]
      %v690 = vld [vmem:[%s2 + $0xc8] sm:$0xff]
      %v691 = vld [vmem:[%s2 + $0xd0] sm:$0xff]
      %v692 = vld [vmem:[%s2 + $0xd8] sm:$0xff]
      %v693 = vld [vmem:[%s2 + $0xe0] sm:$0xff]
      %v694 = vld [vmem:[%s2 + $0xe8] sm:$0xff]
      %v695 = vld [vmem:[%s2 + $0xf0] sm:$0xff]
      %v696 = vld [vmem:[%s2 + $0xf8] sm:$0xff]
      %v697 = vld [vmem:[%s2 + $0x100] sm:$0xff]
      %v698 = vld [vmem:[%s2 + $0x108] sm:$0xff]
      %v699 = vld [vmem:[%s2 + $0x110] sm:$0xff]
      %v700 = vld [vmem:[%s2 + $0x118] sm:$0xff]
      %v701 = vld [vmem:[%s2 + $0x120] sm:$0xff]
      %v702 = vld [vmem:[%s2 + $0x128] sm:$0xff]
      %v703 = vld [vmem:[%s2 + $0x130] sm:$0xff]
      %v704 = vld [vmem:[%s2 + $0x138] sm:$0xff]
      %v705 = vld [vmem:[%s2 + $0x140] sm:$0xff]
      %v706 = vld [vmem:[%s2 + $0x148] sm:$0xff]
      %v707 = vld [vmem:[%s2 + $0x150] sm:$0xff]
      %v708 = vld [vmem:[%s2 + $0x158] sm:$0xff]
      %v709 = vld [vmem:[%s2 + $0x160] sm:$0xff]
      %v710 = vld [vmem:[%s2 + $0x168] sm:$0xff]
      %v711 = vld [vmem:[%s2 + $0x170] sm:$0xff]
      %v712 = vld [vmem:[%s2 + $0x178] sm:$0xff]
      %713 = vmatprep.subr.mxu0 %v711
      %714 = vmatpush1.msra.mxu0 %v710
      %715 = vmatprep.subr.mxu0 %v708
      %716 = vmatpush1.msra.mxu0 %v707
      %717 = vmatprep.subr.mxu0 %v705
      %718 = vmatpush1.msra.mxu0 %v704
      %719 = vmatprep.subr.mxu0 %v702
      %720 = vmatpush1.msra.mxu0 %v701
      %721 = vmatprep.subr.mxu0 %v699
      %722 = vmatpush1.msra.mxu0 %v698
      %723 = vmatprep.subr.mxu0 %v696
      %724 = vmatpush1.msra.mxu0 %v695
      %725 = vmatprep.subr.mxu0 %v693
      %726 = vmatpush1.msra.mxu0 %v692
      %727 = vmatprep.subr.mxu0 %v690
      %728 = vmatpush1.msra.mxu0 %v689
      %729 = vmatprep.subr.mxu0 %v687
      %730 = vmatpush1.msra.mxu0 %v686
      %731 = vmatprep.subr.mxu0 %v684
      %732 = vmatpush1.msra.mxu0 %v683
      %733 = vmatprep.subr.mxu0 %v681
      %734 = vmatpush1.msra.mxu0 %v680
      %735 = vmatprep.subr.mxu0 %v678
      %736 = vmatpush1.msra.mxu0 %v677
      %737 = vmatprep.subr.mxu0 %v675
      %738 = vmatpush1.msra.mxu0 %v674
      %739 = vmatprep.subr.mxu0 %v672
      %740 = vmatpush1.msra.mxu0 %v671
      %741 = vmatprep.subr.mxu0 %v669
      %742 = vmatpush1.msra.mxu0 %v668
      %743 = vmatprep.subr.mxu0 %v666
      %744 = vmatpush1.msra.mxu0 %v665
      %745 = vmatprep.subr.mxu0 0.0
      %746 = vmatpush2.msra.mxu0 0.0
      %747 = vmatprep.subr.mxu0 0.0
      %748 = vmatpush2.msra.mxu0 0.0
      %749 = vmatprep.subr.mxu0 0.0
      %750 = vmatpush2.msra.mxu0 0.0
      %751 = vmatprep.subr.mxu0 0.0
      %752 = vmatpush2.msra.mxu0 0.0
      %753 = vmatprep.subr.mxu0 0.0
      %754 = vmatpush2.msra.mxu0 0.0
      %755 = vmatprep.subr.mxu0 0.0
      %756 = vmatpush2.msra.mxu0 0.0
      %757 = vmatprep.subr.mxu0 0.0
      %758 = vmatpush2.msra.mxu0 0.0
      %759 = vmatprep.subr.mxu0 0.0
      %760 = vmatpush2.msra.mxu0 0.0
      %761 = vmatprep.subr.mxu0 0.0
      %762 = vmatpush2.msra.mxu0 0.0
      %763 = vmatprep.subr.mxu0 0.0
      %764 = vmatpush2.msra.mxu0 0.0
      %765 = vmatprep.subr.mxu0 0.0
      %766 = vmatpush2.msra.mxu0 0.0
      %767 = vmatprep.subr.mxu0 0.0
      %768 = vmatpush2.msra.mxu0 0.0
      %769 = vmatprep.subr.mxu0 0.0
      %770 = vmatpush2.msra.mxu0 0.0
      %771 = vmatprep.subr.mxu0 0.0
      %772 = vmatpush2.msra.mxu0 0.0
      %773 = vmatprep.subr.mxu0 0.0
      %774 = vmatpush2.msra.mxu0 0.0
      %775 = vmatprep.subr.mxu0 0.0
      %776 = vmatpush2.msra.mxu0 0.0
      %777 = vmatprep.mubr.f32.mxu0 0.0
      %778 = vmatmul.mubr.f32.gmra.mxu0 %v654
      %v779 = vpop.f32.mrf.mxu0
      %v780 = vadd.f32 0.0, %v779
      %v781 = vpop.f32.mrf.mxu0
      %v782 = vadd.f32 0.0, %v781
      %783 = vmatprep.mubr.f32.mxu0 0.0
      %784 = vmatmul.mubr.f32.gmra.mxu0 %v655
      %v785 = vpop.f32.mrf.mxu0
      %v786 = vadd.f32 0.0, %v785
      %v787 = vpop.f32.mrf.mxu0
      %v788 = vadd.f32 0.0, %v787
      %789 = vdwg.mxu0
      %790 = vmatprep.subr.mxu0 0.0
      %791 = vmatpush1.msra.mxu0 %v712
      %792 = vmatprep.subr.mxu0 0.0
      %793 = vmatpush1.msra.mxu0 %v709
      %794 = vmatprep.subr.mxu0 0.0
      %795 = vmatpush1.msra.mxu0 %v706
      %796 = vmatprep.subr.mxu0 0.0
      %797 = vmatpush1.msra.mxu0 %v703
      %798 = vmatprep.subr.mxu0 0.0
      %799 = vmatpush1.msra.mxu0 %v700
      %800 = vmatprep.subr.mxu0 0.0
      %801 = vmatpush1.msra.mxu0 %v697
      %802 = vmatprep.subr.mxu0 0.0
      %803 = vmatpush1.msra.mxu0 %v694
      %804 = vmatprep.subr.mxu0 0.0
      %805 = vmatpush1.msra.mxu0 %v691
      %806 = vmatprep.subr.mxu0 0.0
      %807 = vmatpush1.msra.mxu0 %v688
      %808 = vmatprep.subr.mxu0 0.0
      %809 = vmatpush1.msra.mxu0 %v685
      %810 = vmatprep.subr.mxu0 0.0
      %811 = vmatpush1.msra.mxu0 %v682
      %812 = vmatprep.subr.mxu0 0.0
      %813 = vmatpush1.msra.mxu0 %v679
      %814 = vmatprep.subr.mxu0 0.0
      %815 = vmatpush1.msra.mxu0 %v676
      %816 = vmatprep.subr.mxu0 0.0
      %817 = vmatpush1.msra.mxu0 %v673
      %818 = vmatprep.subr.mxu0 0.0
      %819 = vmatpush1.msra.mxu0 %v670
      %820 = vmatprep.subr.mxu0 0.0
      %821 = vmatpush1.msra.mxu0 %v667
      %822 = vmatprep.subr.mxu0 0.0
      %823 = vmatpush2.msra.mxu0 0.0
      %824 = vmatprep.subr.mxu0 0.0
      %825 = vmatpush2.msra.mxu0 0.0
      %826 = vmatprep.subr.mxu0 0.0
      %827 = vmatpush2.msra.mxu0 0.0
      %828 = vmatprep.subr.mxu0 0.0
      %829 = vmatpush2.msra.mxu0 0.0
      %830 = vmatprep.subr.mxu0 0.0
      %831 = vmatpush2.msra.mxu0 0.0
      %832 = vmatprep.subr.mxu0 0.0
      %833 = vmatpush2.msra.mxu0 0.0
      %834 = vmatprep.subr.mxu0 0.0
      %835 = vmatpush2.msra.mxu0 0.0
      %836 = vmatprep.subr.mxu0 0.0
      %837 = vmatpush2.msra.mxu0 0.0
      %838 = vmatprep.subr.mxu0 0.0
      %839 = vmatpush2.msra.mxu0 0.0
      %840 = vmatprep.subr.mxu0 0.0
      %841 = vmatpush2.msra.mxu0 0.0
      %842 = vmatprep.subr.mxu0 0.0
      %843 = vmatpush2.msra.mxu0 0.0
      %844 = vmatprep.subr.mxu0 0.0
      %845 = vmatpush2.msra.mxu0 0.0
      %846 = vmatprep.subr.mxu0 0.0
      %847 = vmatpush2.msra.mxu0 0.0
      %848 = vmatprep.subr.mxu0 0.0
      %849 = vmatpush2.msra.mxu0 0.0
      %850 = vmatprep.subr.mxu0 0.0
      %851 = vmatpush2.msra.mxu0 0.0
      %852 = vmatprep.subr.mxu0 0.0
      %853 = vmatpush2.msra.mxu0 0.0
      %854 = vmatprep.mubr.f32.mxu0 0.0
      %855 = vmatmul.mubr.f32.gmra.mxu0 %v654
      %v856 = vpop.f32.mrf.mxu0
      %v857 = vadd.f32 0.0, %v856
      %v858 = vpop.f32.mrf.mxu0
      %859 = vmatprep.mubr.f32.mxu0 0.0
      %860 = vmatmul.mubr.f32.gmra.mxu0 %v655
      %v861 = vpop.f32.mrf.mxu0
      %v862 = vadd.f32 0.0, %v861
      %v863 = vpop.f32.mrf.mxu0
      %864 = vdwg.mxu0
      %v865 = vadd.f32 %v659, %v780
      %v866 = vadd.f32 %v662, %v786
      %v867 = vadd.f32 %v660, %v782
      %v868 = vadd.f32 %v663, %v788
      %v870 = vlaneseq
      %v871 = vshrl.u32 %v870, 7
      %v872 = vsub.s32 0, %v871
      %v873 = vrot.slane %v653, %v872
      %v875 = vadd.f32 %v857, %v873
      %v876 = vadd.f32 %v862, %v873
      %v877 = vmul.f32 %v865, 0.5
      %v878 = vmul.f32 %v866, 0.5
      %v879 = vtanh.pop %v877
      %v880 = vtanh.pop %v878
      %v881 = vadd.f32 %v879, 1.0
      %v882 = vadd.f32 %v880, 1.0
      %v883 = vmul.f32 %v881, 0.5
      %v884 = vmul.f32 %v882, 0.5
      %v885 = vmul.f32 %v867, 0.5
      %v886 = vmul.f32 %v868, 0.5
      %v887 = vtanh.pop %v885
      %v888 = vtanh.pop %v886
      %v889 = vadd.f32 %v887, 1.0
      %v890 = vadd.f32 %v888, 1.0
      %v891 = vmul.f32 %v889, 0.5
      %v892 = vmul.f32 %v890, 0.5
      %v893 = vmul.f32 %v883, %v875
      %v894 = vmul.f32 %v884, %v876
      %v895 = vadd.f32 %v661, %v893
      %v896 = vadd.f32 %v664, %v894
      %v897 = vtanh.pop %v895
      %v898 = vtanh.pop %v896
      %v899 = vsub.f32 1.0, %v891
      %v900 = vsub.f32 1.0, %v892
      %v901 = vmul.f32 %v899, %v897
      %v902 = vmul.f32 %v900, %v898
      %v903 = vmul.f32 %v891, %v654
      %v904 = vmul.f32 %v892, %v655
      %v905 = vadd.f32 %v901, %v903
      %v906 = vadd.f32 %v902, %v904
      %s907 = smul.u32 2, 3
      %s908 = smul.addr %s907, 8
      %s909 = scalar_lea.vmem [#allocation3], %s908
      %v910 = vld [vmem:[%s909] sm:$0xff]
      %v911 = vld [vmem:[%s909 + $0x8] sm:$0xff]
      %v912 = vld [vmem:[%s909 + $0x10] sm:$0xff]
      %v913 = vld [vmem:[%s909 + $0x18] sm:$0xff]
      %v914 = vld [vmem:[%s909 + $0x20] sm:$0xff]
      %v915 = vld [vmem:[%s909 + $0x28] sm:$0xff]
      %916 = vmatprep.subr.mxu0 %v711
      %917 = vmatpush1.msra.mxu0 %v710
      %918 = vmatprep.subr.mxu0 %v708
      %919 = vmatpush1.msra.mxu0 %v707
      %920 = vmatprep.subr.mxu0 %v705
      %921 = vmatpush1.msra.mxu0 %v704
      %922 = vmatprep.subr.mxu0 %v702
      %923 = vmatpush1.msra.mxu0 %v701
      %924 = vmatprep.subr.mxu0 %v699
      %925 = vmatpush1.msra.mxu0 %v698
      %926 = vmatprep.subr.mxu0 %v696
      %927 = vmatpush1.msra.mxu0 %v695
      %928 = vmatprep.subr.mxu0 %v693
      %929 = vmatpush1.msra.mxu0 %v692
      %930 = vmatprep.subr.mxu0 %v690
      %931 = vmatpush1.msra.mxu0 %v689
      %932 = vmatprep.subr.mxu0 %v687
      %933 = vmatpush1.msra.mxu0 %v686
      %934 = vmatprep.subr.mxu0 %v684
      %935 = vmatpush1.msra.mxu0 %v683
      %936 = vmatprep.subr.mxu0 %v681
      %937 = vmatpush1.msra.mxu0 %v680
      %938 = vmatprep.subr.mxu0 %v678
      %939 = vmatpush1.msra.mxu0 %v677
      %940 = vmatprep.subr.mxu0 %v675
      %941 = vmatpush1.msra.mxu0 %v674
      %942 = vmatprep.subr.mxu0 %v672
      %943 = vmatpush1.msra.mxu0 %v671
      %944 = vmatprep.subr.mxu0 %v669
      %945 = vmatpush1.msra.mxu0 %v668
      %946 = vmatprep.subr.mxu0 %v666
      %947 = vmatpush1.msra.mxu0 %v665
      %948 = vmatprep.subr.mxu0 0.0
      %949 = vmatpush2.msra.mxu0 0.0
      %950 = vmatprep.subr.mxu0 0.0
      %951 = vmatpush2.msra.mxu0 0.0
      %952 = vmatprep.subr.mxu0 0.0
      %953 = vmatpush2.msra.mxu0 0.0
      %954 = vmatprep.subr.mxu0 0.0
      %955 = vmatpush2.msra.mxu0 0.0
      %956 = vmatprep.subr.mxu0 0.0
      %957 = vmatpush2.msra.mxu0 0.0
      %958 = vmatprep.subr.mxu0 0.0
      %959 = vmatpush2.msra.mxu0 0.0
      %960 = vmatprep.subr.mxu0 0.0
      %961 = vmatpush2.msra.mxu0 0.0
      %962 = vmatprep.subr.mxu0 0.0
      %963 = vmatpush2.msra.mxu0 0.0
      %964 = vmatprep.subr.mxu0 0.0
      %965 = vmatpush2.msra.mxu0 0.0
      %966 = vmatprep.subr.mxu0 0.0
      %967 = vmatpush2.msra.mxu0 0.0
      %968 = vmatprep.subr.mxu0 0.0
      %969 = vmatpush2.msra.mxu0 0.0
      %970 = vmatprep.subr.mxu0 0.0
      %971 = vmatpush2.msra.mxu0 0.0
      %972 = vmatprep.subr.mxu0 0.0
      %973 = vmatpush2.msra.mxu0 0.0
      %974 = vmatprep.subr.mxu0 0.0
      %975 = vmatpush2.msra.mxu0 0.0
      %976 = vmatprep.subr.mxu0 0.0
      %977 = vmatpush2.msra.mxu0 0.0
      %978 = vmatprep.subr.mxu0 0.0
      %979 = vmatpush2.msra.mxu0 0.0
      %980 = vmatprep.mubr.f32.mxu0 0.0
      %981 = vmatmul.mubr.f32.gmra.mxu0 %v905
      %v982 = vpop.f32.mrf.mxu0
      %v983 = vadd.f32 0.0, %v982
      %v984 = vpop.f32.mrf.mxu0
      %v985 = vadd.f32 0.0, %v984
      %986 = vmatprep.mubr.f32.mxu0 0.0
      %987 = vmatmul.mubr.f32.gmra.mxu0 %v906
      %v988 = vpop.f32.mrf.mxu0
      %v989 = vadd.f32 0.0, %v988
      %v990 = vpop.f32.mrf.mxu0
      %v991 = vadd.f32 0.0, %v990
      %992 = vdwg.mxu0
      %993 = vmatprep.subr.mxu0 0.0
      %994 = vmatpush1.msra.mxu0 %v712
      %995 = vmatprep.subr.mxu0 0.0
      %996 = vmatpush1.msra.mxu0 %v709
      %997 = vmatprep.subr.mxu0 0.0
      %998 = vmatpush1.msra.mxu0 %v706
      %999 = vmatprep.subr.mxu0 0.0
      %1000 = vmatpush1.msra.mxu0 %v703
      %1001 = vmatprep.subr.mxu0 0.0
      %1002 = vmatpush1.msra.mxu0 %v700
      %1003 = vmatprep.subr.mxu0 0.0
      %1004 = vmatpush1.msra.mxu0 %v697
      %1005 = vmatprep.subr.mxu0 0.0
      %1006 = vmatpush1.msra.mxu0 %v694
      %1007 = vmatprep.subr.mxu0 0.0
      %1008 = vmatpush1.msra.mxu0 %v691
      %1009 = vmatprep.subr.mxu0 0.0
      %1010 = vmatpush1.msra.mxu0 %v688
      %1011 = vmatprep.subr.mxu0 0.0
      %1012 = vmatpush1.msra.mxu0 %v685
      %1013 = vmatprep.subr.mxu0 0.0
      %1014 = vmatpush1.msra.mxu0 %v682
      %1015 = vmatprep.subr.mxu0 0.0
      %1016 = vmatpush1.msra.mxu0 %v679
      %1017 = vmatprep.subr.mxu0 0.0
      %1018 = vmatpush1.msra.mxu0 %v676
      %1019 = vmatprep.subr.mxu0 0.0
      %1020 = vmatpush1.msra.mxu0 %v673
      %1021 = vmatprep.subr.mxu0 0.0
      %1022 = vmatpush1.msra.mxu0 %v670
      %1023 = vmatprep.subr.mxu0 0.0
      %1024 = vmatpush1.msra.mxu0 %v667
      %1025 = vmatprep.subr.mxu0 0.0
      %1026 = vmatpush2.msra.mxu0 0.0
      %1027 = vmatprep.subr.mxu0 0.0
      %1028 = vmatpush2.msra.mxu0 0.0
      %1029 = vmatprep.subr.mxu0 0.0
      %1030 = vmatpush2.msra.mxu0 0.0
      %1031 = vmatprep.subr.mxu0 0.0
      %1032 = vmatpush2.msra.mxu0 0.0
      %1033 = vmatprep.subr.mxu0 0.0
      %1034 = vmatpush2.msra.mxu0 0.0
      %1035 = vmatprep.subr.mxu0 0.0
      %1036 = vmatpush2.msra.mxu0 0.0
      %1037 = vmatprep.subr.mxu0 0.0
      %1038 = vmatpush2.msra.mxu0 0.0
      %1039 = vmatprep.subr.mxu0 0.0
      %1040 = vmatpush2.msra.mxu0 0.0
      %1041 = vmatprep.subr.mxu0 0.0
      %1042 = vmatpush2.msra.mxu0 0.0
      %1043 = vmatprep.subr.mxu0 0.0
      %1044 = vmatpush2.msra.mxu0 0.0
      %1045 = vmatprep.subr.mxu0 0.0
      %1046 = vmatpush2.msra.mxu0 0.0
      %1047 = vmatprep.subr.mxu0 0.0
      %1048 = vmatpush2.msra.mxu0 0.0
      %1049 = vmatprep.subr.mxu0 0.0
      %1050 = vmatpush2.msra.mxu0 0.0
      %1051 = vmatprep.subr.mxu0 0.0
      %1052 = vmatpush2.msra.mxu0 0.0
      %1053 = vmatprep.subr.mxu0 0.0
      %1054 = vmatpush2.msra.mxu0 0.0
      %1055 = vmatprep.subr.mxu0 0.0
      %1056 = vmatpush2.msra.mxu0 0.0
      %1057 = vmatprep.mubr.f32.mxu0 0.0
      %1058 = vmatmul.mubr.f32.gmra.mxu0 %v905
      %v1059 = vpop.f32.mrf.mxu0
      %v1060 = vadd.f32 0.0, %v1059
      %v1061 = vpop.f32.mrf.mxu0
      %1062 = vmatprep.mubr.f32.mxu0 0.0
      %1063 = vmatmul.mubr.f32.gmra.mxu0 %v906
      %v1064 = vpop.f32.mrf.mxu0
      %v1065 = vadd.f32 0.0, %v1064
      %v1066 = vpop.f32.mrf.mxu0
      %1067 = vdwg.mxu0
      %v1068 = vadd.f32 %v910, %v983
      %v1069 = vadd.f32 %v913, %v989
      %v1070 = vadd.f32 %v911, %v985
      %v1071 = vadd.f32 %v914, %v991
      %v1072 = vadd.f32 %v1060, %v873
      %v1073 = vadd.f32 %v1065, %v873
      %v1074 = vmul.f32 %v1068, 0.5
      %v1075 = vmul.f32 %v1069, 0.5
      %v1076 = vtanh.pop %v1074
      %v1077 = vtanh.pop %v1075
      %v1078 = vadd.f32 %v1076, 1.0
      %v1079 = vadd.f32 %v1077, 1.0
      %v1080 = vmul.f32 %v1078, 0.5
      %v1081 = vmul.f32 %v1079, 0.5
      %v1082 = vmul.f32 %v1070, 0.5
      %v1083 = vmul.f32 %v1071, 0.5
      %v1084 = vtanh.pop %v1082
      %v1085 = vtanh.pop %v1083
      %v1086 = vadd.f32 %v1084, 1.0
      %v1087 = vadd.f32 %v1085, 1.0
      %v1088 = vmul.f32 %v1086, 0.5
      %v1089 = vmul.f32 %v1087, 0.5
      %v1090 = vmul.f32 %v1080, %v1072
      %v1091 = vmul.f32 %v1081, %v1073
      %v1092 = vadd.f32 %v912, %v1090
      %v1093 = vadd.f32 %v915, %v1091
      %v1094 = vtanh.pop %v1092
      %v1095 = vtanh.pop %v1093
      %v1096 = vsub.f32 1.0, %v1088
      %v1097 = vsub.f32 1.0, %v1089
      %v1098 = vmul.f32 %v1096, %v1094
      %v1099 = vmul.f32 %v1097, %v1095
      %v1100 = vmul.f32 %v1088, %v905
      %v1101 = vmul.f32 %v1089, %v906
      %v1102 = vadd.f32 %v1098, %v1100
      %v1103 = vadd.f32 %v1099, %v1101
      %s1104 = smul.u32 4, 3
      %s1105 = smul.addr %s1104, 8
      %s1106 = scalar_lea.vmem [#allocation3], %s1105
      %v1107 = vld [vmem:[%s1106] sm:$0xff]
      %v1108 = vld [vmem:[%s1106 + $0x8] sm:$0xff]
      %v1109 = vld [vmem:[%s1106 + $0x10] sm:$0xff]
      %v1110 = vld [vmem:[%s1106 + $0x18] sm:$0xff]
      %v1111 = vld [vmem:[%s1106 + $0x20] sm:$0xff]
      %v1112 = vld [vmem:[%s1106 + $0x28] sm:$0xff]
      %1113 = vmatprep.subr.mxu0 %v711
      %1114 = vmatpush1.msra.mxu0 %v710
      %1115 = vmatprep.subr.mxu0 %v708
      %1116 = vmatpush1.msra.mxu0 %v707
      %1117 = vmatprep.subr.mxu0 %v705
      %1118 = vmatpush1.msra.mxu0 %v704
      %1119 = vmatprep.subr.mxu0 %v702
      %1120 = vmatpush1.msra.mxu0 %v701
      %1121 = vmatprep.subr.mxu0 %v699
      %1122 = vmatpush1.msra.mxu0 %v698
      %1123 = vmatprep.subr.mxu0 %v696
      %1124 = vmatpush1.msra.mxu0 %v695
      %1125 = vmatprep.subr.mxu0 %v693
      %1126 = vmatpush1.msra.mxu0 %v692
      %1127 = vmatprep.subr.mxu0 %v690
      %1128 = vmatpush1.msra.mxu0 %v689
      %1129 = vmatprep.subr.mxu0 %v687
      %1130 = vmatpush1.msra.mxu0 %v686
      %1131 = vmatprep.subr.mxu0 %v684
      %1132 = vmatpush1.msra.mxu0 %v683
      %1133 = vmatprep.subr.mxu0 %v681
      %1134 = vmatpush1.msra.mxu0 %v680
      %1135 = vmatprep.subr.mxu0 %v678
      %1136 = vmatpush1.msra.mxu0 %v677
      %1137 = vmatprep.subr.mxu0 %v675
      %1138 = vmatpush1.msra.mxu0 %v674
      %1139 = vmatprep.subr.mxu0 %v672
      %1140 = vmatpush1.msra.mxu0 %v671
      %1141 = vmatprep.subr.mxu0 %v669
      %1142 = vmatpush1.msra.mxu0 %v668
      %1143 = vmatprep.subr.mxu0 %v666
      %1144 = vmatpush1.msra.mxu0 %v665
      %1145 = vmatprep.subr.mxu0 0.0
      %1146 = vmatpush2.msra.mxu0 0.0
      %1147 = vmatprep.subr.mxu0 0.0
      %1148 = vmatpush2.msra.mxu0 0.0
      %1149 = vmatprep.subr.mxu0 0.0
      %1150 = vmatpush2.msra.mxu0 0.0
      %1151 = vmatprep.subr.mxu0 0.0
      %1152 = vmatpush2.msra.mxu0 0.0
      %1153 = vmatprep.subr.mxu0 0.0
      %1154 = vmatpush2.msra.mxu0 0.0
      %1155 = vmatprep.subr.mxu0 0.0
      %1156 = vmatpush2.msra.mxu0 0.0
      %1157 = vmatprep.subr.mxu0 0.0
      %1158 = vmatpush2.msra.mxu0 0.0
      %1159 = vmatprep.subr.mxu0 0.0
      %1160 = vmatpush2.msra.mxu0 0.0
      %1161 = vmatprep.subr.mxu0 0.0
      %1162 = vmatpush2.msra.mxu0 0.0
      %1163 = vmatprep.subr.mxu0 0.0
      %1164 = vmatpush2.msra.mxu0 0.0
      %1165 = vmatprep.subr.mxu0 0.0
      %1166 = vmatpush2.msra.mxu0 0.0
      %1167 = vmatprep.subr.mxu0 0.0
      %1168 = vmatpush2.msra.mxu0 0.0
      %1169 = vmatprep.subr.mxu0 0.0
      %1170 = vmatpush2.msra.mxu0 0.0
      %1171 = vmatprep.subr.mxu0 0.0
      %1172 = vmatpush2.msra.mxu0 0.0
      %1173 = vmatprep.subr.mxu0 0.0
      %1174 = vmatpush2.msra.mxu0 0.0
      %1175 = vmatprep.subr.mxu0 0.0
      %1176 = vmatpush2.msra.mxu0 0.0
      %1177 = vmatprep.mubr.f32.mxu0 0.0
      %1178 = vmatmul.mubr.f32.gmra.mxu0 %v1102
      %v1179 = vpop.f32.mrf.mxu0
      %v1180 = vadd.f32 0.0, %v1179
      %v1181 = vpop.f32.mrf.mxu0
      %v1182 = vadd.f32 0.0, %v1181
      %1183 = vmatprep.mubr.f32.mxu0 0.0
      %1184 = vmatmul.mubr.f32.gmra.mxu0 %v1103
      %v1185 = vpop.f32.mrf.mxu0
      %v1186 = vadd.f32 0.0, %v1185
      %v1187 = vpop.f32.mrf.mxu0
      %v1188 = vadd.f32 0.0, %v1187
      %1189 = vdwg.mxu0
      %1190 = vmatprep.subr.mxu0 0.0
      %1191 = vmatpush1.msra.mxu0 %v712
      %1192 = vmatprep.subr.mxu0 0.0
      %1193 = vmatpush1.msra.mxu0 %v709
      %1194 = vmatprep.subr.mxu0 0.0
      %1195 = vmatpush1.msra.mxu0 %v706
      %1196 = vmatprep.subr.mxu0 0.0
      %1197 = vmatpush1.msra.mxu0 %v703
      %1198 = vmatprep.subr.mxu0 0.0
      %1199 = vmatpush1.msra.mxu0 %v700
      %1200 = vmatprep.subr.mxu0 0.0
      %1201 = vmatpush1.msra.mxu0 %v697
      %1202 = vmatprep.subr.mxu0 0.0
      %1203 = vmatpush1.msra.mxu0 %v694
      %1204 = vmatprep.subr.mxu0 0.0
      %1205 = vmatpush1.msra.mxu0 %v691
      %1206 = vmatprep.subr.mxu0 0.0
      %1207 = vmatpush1.msra.mxu0 %v688
      %1208 = vmatprep.subr.mxu0 0.0
      %1209 = vmatpush1.msra.mxu0 %v685
      %1210 = vmatprep.subr.mxu0 0.0
      %1211 = vmatpush1.msra.mxu0 %v682
      %1212 = vmatprep.subr.mxu0 0.0
      %1213 = vmatpush1.msra.mxu0 %v679
      %1214 = vmatprep.subr.mxu0 0.0
      %1215 = vmatpush1.msra.mxu0 %v676
      %1216 = vmatprep.subr.mxu0 0.0
      %1217 = vmatpush1.msra.mxu0 %v673
      %1218 = vmatprep.subr.mxu0 0.0
      %1219 = vmatpush1.msra.mxu0 %v670
      %1220 = vmatprep.subr.mxu0 0.0
      %1221 = vmatpush1.msra.mxu0 %v667
      %1222 = vmatprep.subr.mxu0 0.0
      %1223 = vmatpush2.msra.mxu0 0.0
      %1224 = vmatprep.subr.mxu0 0.0
      %1225 = vmatpush2.msra.mxu0 0.0
      %1226 = vmatprep.subr.mxu0 0.0
      %1227 = vmatpush2.msra.mxu0 0.0
      %1228 = vmatprep.subr.mxu0 0.0
      %1229 = vmatpush2.msra.mxu0 0.0
      %1230 = vmatprep.subr.mxu0 0.0
      %1231 = vmatpush2.msra.mxu0 0.0
      %1232 = vmatprep.subr.mxu0 0.0
      %1233 = vmatpush2.msra.mxu0 0.0
      %1234 = vmatprep.subr.mxu0 0.0
      %1235 = vmatpush2.msra.mxu0 0.0
      %1236 = vmatprep.subr.mxu0 0.0
      %1237 = vmatpush2.msra.mxu0 0.0
      %1238 = vmatprep.subr.mxu0 0.0
      %1239 = vmatpush2.msra.mxu0 0.0
      %1240 = vmatprep.subr.mxu0 0.0
      %1241 = vmatpush2.msra.mxu0 0.0
      %1242 = vmatprep.subr.mxu0 0.0
      %1243 = vmatpush2.msra.mxu0 0.0
      %1244 = vmatprep.subr.mxu0 0.0
      %1245 = vmatpush2.msra.mxu0 0.0
      %1246 = vmatprep.subr.mxu0 0.0
      %1247 = vmatpush2.msra.mxu0 0.0
      %1248 = vmatprep.subr.mxu0 0.0
      %1249 = vmatpush2.msra.mxu0 0.0
      %1250 = vmatprep.subr.mxu0 0.0
      %1251 = vmatpush2.msra.mxu0 0.0
      %1252 = vmatprep.subr.mxu0 0.0
      %1253 = vmatpush2.msra.mxu0 0.0
      %1254 = vmatprep.mubr.f32.mxu0 0.0
      %1255 = vmatmul.mubr.f32.gmra.mxu0 %v1102
      %v1256 = vpop.f32.mrf.mxu0
      %v1257 = vadd.f32 0.0, %v1256
      %v1258 = vpop.f32.mrf.mxu0
      %1259 = vmatprep.mubr.f32.mxu0 0.0
      %1260 = vmatmul.mubr.f32.gmra.mxu0 %v1103
      %v1261 = vpop.f32.mrf.mxu0
      %v1262 = vadd.f32 0.0, %v1261
      %v1263 = vpop.f32.mrf.mxu0
      %1264 = vdwg.mxu0
      %v1265 = vadd.f32 %v1107, %v1180
      %v1266 = vadd.f32 %v1110, %v1186
      %v1267 = vadd.f32 %v1108, %v1182
      %v1268 = vadd.f32 %v1111, %v1188
      %v1269 = vadd.f32 %v1257, %v873
      %v1270 = vadd.f32 %v1262, %v873
      %v1271 = vmul.f32 %v1265, 0.5
      %v1272 = vmul.f32 %v1266, 0.5
      %v1273 = vtanh.pop %v1271
      %v1274 = vtanh.pop %v1272
      %v1275 = vadd.f32 %v1273, 1.0
      %v1276 = vadd.f32 %v1274, 1.0
      %v1277 = vmul.f32 %v1275, 0.5
      %v1278 = vmul.f32 %v1276, 0.5
      %v1279 = vmul.f32 %v1267, 0.5
      %v1280 = vmul.f32 %v1268, 0.5
      %v1281 = vtanh.pop %v1279
      %v1282 = vtanh.pop %v1280
      %v1283 = vadd.f32 %v1281, 1.0
      %v1284 = vadd.f32 %v1282, 1.0
      %v1285 = vmul.f32 %v1283, 0.5
      %v1286 = vmul.f32 %v1284, 0.5
      %v1287 = vmul.f32 %v1277, %v1269
      %v1288 = vmul.f32 %v1278, %v1270
      %v1289 = vadd.f32 %v1109, %v1287
      %v1290 = vadd.f32 %v1112, %v1288
      %v1291 = vtanh.pop %v1289
      %v1292 = vtanh.pop %v1290
      %v1293 = vsub.f32 1.0, %v1285
      %v1294 = vsub.f32 1.0, %v1286
      %v1295 = vmul.f32 %v1293, %v1291
      %v1296 = vmul.f32 %v1294, %v1292
      %v1297 = vmul.f32 %v1285, %v1102
      %v1298 = vmul.f32 %v1286, %v1103
      %v1299 = vadd.f32 %v1295, %v1297
      %v1300 = vadd.f32 %v1296, %v1298
      %s1301 = smul.u32 6, 3
      %s1302 = smul.addr %s1301, 8
      %s1303 = scalar_lea.vmem [#allocation3], %s1302
      %v1304 = vld [vmem:[%s1303] sm:$0xff]
      %v1305 = vld [vmem:[%s1303 + $0x8] sm:$0xff]
      %v1306 = vld [vmem:[%s1303 + $0x10] sm:$0xff]
      %v1307 = vld [vmem:[%s1303 + $0x18] sm:$0xff]
      %v1308 = vld [vmem:[%s1303 + $0x20] sm:$0xff]
      %v1309 = vld [vmem:[%s1303 + $0x28] sm:$0xff]
      %1310 = vmatprep.subr.mxu0 %v711
      %1311 = vmatpush1.msra.mxu0 %v710
      %1312 = vmatprep.subr.mxu0 %v708
      %1313 = vmatpush1.msra.mxu0 %v707
      %1314 = vmatprep.subr.mxu0 %v705
      %1315 = vmatpush1.msra.mxu0 %v704
      %1316 = vmatprep.subr.mxu0 %v702
      %1317 = vmatpush1.msra.mxu0 %v701
      %1318 = vmatprep.subr.mxu0 %v699
      %1319 = vmatpush1.msra.mxu0 %v698
      %1320 = vmatprep.subr.mxu0 %v696
      %1321 = vmatpush1.msra.mxu0 %v695
      %1322 = vmatprep.subr.mxu0 %v693
      %1323 = vmatpush1.msra.mxu0 %v692
      %1324 = vmatprep.subr.mxu0 %v690
      %1325 = vmatpush1.msra.mxu0 %v689
      %1326 = vmatprep.subr.mxu0 %v687
      %1327 = vmatpush1.msra.mxu0 %v686
      %1328 = vmatprep.subr.mxu0 %v684
      %1329 = vmatpush1.msra.mxu0 %v683
      %1330 = vmatprep.subr.mxu0 %v681
      %1331 = vmatpush1.msra.mxu0 %v680
      %1332 = vmatprep.subr.mxu0 %v678
      %1333 = vmatpush1.msra.mxu0 %v677
      %1334 = vmatprep.subr.mxu0 %v675
      %1335 = vmatpush1.msra.mxu0 %v674
      %1336 = vmatprep.subr.mxu0 %v672
      %1337 = vmatpush1.msra.mxu0 %v671
      %1338 = vmatprep.subr.mxu0 %v669
      %1339 = vmatpush1.msra.mxu0 %v668
      %1340 = vmatprep.subr.mxu0 %v666
      %1341 = vmatpush1.msra.mxu0 %v665
      %1342 = vmatprep.subr.mxu0 0.0
      %1343 = vmatpush2.msra.mxu0 0.0
      %1344 = vmatprep.subr.mxu0 0.0
      %1345 = vmatpush2.msra.mxu0 0.0
      %1346 = vmatprep.subr.mxu0 0.0
      %1347 = vmatpush2.msra.mxu0 0.0
      %1348 = vmatprep.subr.mxu0 0.0
      %1349 = vmatpush2.msra.mxu0 0.0
      %1350 = vmatprep.subr.mxu0 0.0
      %1351 = vmatpush2.msra.mxu0 0.0
      %1352 = vmatprep.subr.mxu0 0.0
      %1353 = vmatpush2.msra.mxu0 0.0
      %1354 = vmatprep.subr.mxu0 0.0
      %1355 = vmatpush2.msra.mxu0 0.0
      %1356 = vmatprep.subr.mxu0 0.0
      %1357 = vmatpush2.msra.mxu0 0.0
      %1358 = vmatprep.subr.mxu0 0.0
      %1359 = vmatpush2.msra.mxu0 0.0
      %1360 = vmatprep.subr.mxu0 0.0
      %1361 = vmatpush2.msra.mxu0 0.0
      %1362 = vmatprep.subr.mxu0 0.0
      %1363 = vmatpush2.msra.mxu0 0.0
      %1364 = vmatprep.subr.mxu0 0.0
      %1365 = vmatpush2.msra.mxu0 0.0
      %1366 = vmatprep.subr.mxu0 0.0
      %1367 = vmatpush2.msra.mxu0 0.0
      %1368 = vmatprep.subr.mxu0 0.0
      %1369 = vmatpush2.msra.mxu0 0.0
      %1370 = vmatprep.subr.mxu0 0.0
      %1371 = vmatpush2.msra.mxu0 0.0
      %1372 = vmatprep.subr.mxu0 0.0
      %1373 = vmatpush2.msra.mxu0 0.0
      %1374 = vmatprep.mubr.f32.mxu0 0.0
      %1375 = vmatmul.mubr.f32.gmra.mxu0 %v1299
      %v1376 = vpop.f32.mrf.mxu0
      %v1377 = vadd.f32 0.0, %v1376
      %v1378 = vpop.f32.mrf.mxu0
      %v1379 = vadd.f32 0.0, %v1378
      %1380 = vmatprep.mubr.f32.mxu0 0.0
      %1381 = vmatmul.mubr.f32.gmra.mxu0 %v1300
      %v1382 = vpop.f32.mrf.mxu0
      %v1383 = vadd.f32 0.0, %v1382
      %v1384 = vpop.f32.mrf.mxu0
      %v1385 = vadd.f32 0.0, %v1384
      %1386 = vdwg.mxu0
      %1387 = vmatprep.subr.mxu0 0.0
      %1388 = vmatpush1.msra.mxu0 %v712
      %1389 = vmatprep.subr.mxu0 0.0
      %1390 = vmatpush1.msra.mxu0 %v709
      %1391 = vmatprep.subr.mxu0 0.0
      %1392 = vmatpush1.msra.mxu0 %v706
      %1393 = vmatprep.subr.mxu0 0.0
      %1394 = vmatpush1.msra.mxu0 %v703
      %1395 = vmatprep.subr.mxu0 0.0
      %1396 = vmatpush1.msra.mxu0 %v700
      %1397 = vmatprep.subr.mxu0 0.0
      %1398 = vmatpush1.msra.mxu0 %v697
      %1399 = vmatprep.subr.mxu0 0.0
      %1400 = vmatpush1.msra.mxu0 %v694
      %1401 = vmatprep.subr.mxu0 0.0
      %1402 = vmatpush1.msra.mxu0 %v691
      %1403 = vmatprep.subr.mxu0 0.0
      %1404 = vmatpush1.msra.mxu0 %v688
      %1405 = vmatprep.subr.mxu0 0.0
      %1406 = vmatpush1.msra.mxu0 %v685
      %1407 = vmatprep.subr.mxu0 0.0
      %1408 = vmatpush1.msra.mxu0 %v682
      %1409 = vmatprep.subr.mxu0 0.0
      %1410 = vmatpush1.msra.mxu0 %v679
      %1411 = vmatprep.subr.mxu0 0.0
      %1412 = vmatpush1.msra.mxu0 %v676
      %1413 = vmatprep.subr.mxu0 0.0
      %1414 = vmatpush1.msra.mxu0 %v673
      %1415 = vmatprep.subr.mxu0 0.0
      %1416 = vmatpush1.msra.mxu0 %v670
      %1417 = vmatprep.subr.mxu0 0.0
      %1418 = vmatpush1.msra.mxu0 %v667
      %1419 = vmatprep.subr.mxu0 0.0
      %1420 = vmatpush2.msra.mxu0 0.0
      %1421 = vmatprep.subr.mxu0 0.0
      %1422 = vmatpush2.msra.mxu0 0.0
      %1423 = vmatprep.subr.mxu0 0.0
      %1424 = vmatpush2.msra.mxu0 0.0
      %1425 = vmatprep.subr.mxu0 0.0
      %1426 = vmatpush2.msra.mxu0 0.0
      %1427 = vmatprep.subr.mxu0 0.0
      %1428 = vmatpush2.msra.mxu0 0.0
      %1429 = vmatprep.subr.mxu0 0.0
      %1430 = vmatpush2.msra.mxu0 0.0
      %1431 = vmatprep.subr.mxu0 0.0
      %1432 = vmatpush2.msra.mxu0 0.0
      %1433 = vmatprep.subr.mxu0 0.0
      %1434 = vmatpush2.msra.mxu0 0.0
      %1435 = vmatprep.subr.mxu0 0.0
      %1436 = vmatpush2.msra.mxu0 0.0
      %1437 = vmatprep.subr.mxu0 0.0
      %1438 = vmatpush2.msra.mxu0 0.0
      %1439 = vmatprep.subr.mxu0 0.0
      %1440 = vmatpush2.msra.mxu0 0.0
      %1441 = vmatprep.subr.mxu0 0.0
      %1442 = vmatpush2.msra.mxu0 0.0
      %1443 = vmatprep.subr.mxu0 0.0
      %1444 = vmatpush2.msra.mxu0 0.0
      %1445 = vmatprep.subr.mxu0 0.0
      %1446 = vmatpush2.msra.mxu0 0.0
      %1447 = vmatprep.subr.mxu0 0.0
      %1448 = vmatpush2.msra.mxu0 0.0
      %1449 = vmatprep.subr.mxu0 0.0
      %1450 = vmatpush2.msra.mxu0 0.0
      %1451 = vmatprep.mubr.f32.mxu0 0.0
      %1452 = vmatmul.mubr.f32.gmra.mxu0 %v1299
      %v1453 = vpop.f32.mrf.mxu0
      %v1454 = vadd.f32 0.0, %v1453
      %v1455 = vpop.f32.mrf.mxu0
      %1456 = vmatprep.mubr.f32.mxu0 0.0
      %1457 = vmatmul.mubr.f32.gmra.mxu0 %v1300
      %v1458 = vpop.f32.mrf.mxu0
      %v1459 = vadd.f32 0.0, %v1458
      %v1460 = vpop.f32.mrf.mxu0
      %1461 = vdwg.mxu0
      %v1462 = vadd.f32 %v1304, %v1377
      %v1463 = vadd.f32 %v1307, %v1383
      %v1464 = vadd.f32 %v1305, %v1379
      %v1465 = vadd.f32 %v1308, %v1385
      %v1466 = vadd.f32 %v1454, %v873
      %v1467 = vadd.f32 %v1459, %v873
      %v1468 = vmul.f32 %v1462, 0.5
      %v1469 = vmul.f32 %v1463, 0.5
      %v1470 = vtanh.pop %v1468
      %v1471 = vtanh.pop %v1469
      %v1472 = vadd.f32 %v1470, 1.0
      %v1473 = vadd.f32 %v1471, 1.0
      %v1474 = vmul.f32 %v1472, 0.5
      %v1475 = vmul.f32 %v1473, 0.5
      %v1476 = vmul.f32 %v1464, 0.5
      %v1477 = vmul.f32 %v1465, 0.5
      %v1478 = vtanh.pop %v1476
      %v1479 = vtanh.pop %v1477
      %v1480 = vadd.f32 %v1478, 1.0
      %v1481 = vadd.f32 %v1479, 1.0
      %v1482 = vmul.f32 %v1480, 0.5
      %v1483 = vmul.f32 %v1481, 0.5
      %v1484 = vmul.f32 %v1474, %v1466
      %v1485 = vmul.f32 %v1475, %v1467
      %v1486 = vadd.f32 %v1306, %v1484
      %v1487 = vadd.f32 %v1309, %v1485
      %v1488 = vtanh.pop %v1486
      %v1489 = vtanh.pop %v1487
      %v1490 = vsub.f32 1.0, %v1482
      %v1491 = vsub.f32 1.0, %v1483
      %v1492 = vmul.f32 %v1490, %v1488
      %v1493 = vmul.f32 %v1491, %v1489
      %v1494 = vmul.f32 %v1482, %v1299
      %v1495 = vmul.f32 %v1483, %v1300
      %v1496 = vadd.f32 %v1492, %v1494
      %v1497 = vadd.f32 %v1493, %v1495
      %1498 = vst [vmem:[#allocation2] sm:$0xff] %v1496
      %1499 = vst [vmem:[#allocation2 + $0x8] sm:$0xff] %v1497
      %p1500 = scmp.eq.s32.totalorder %s27, 1
      // Predicated region
      $region53: #{discriminator_forward.1} parent=47 // pred_check
        %p1501 = pneg %p1500
      $region54: #{discriminator_forward.1} parent=47 // pred_check_branch
        %1503 = sbr.rel (%p1501) target = $region56
      $region55: #{discriminator_forward.1} parent=47 // pred_region
        %v1504 = vld [vmem:[#allocation2] sm:$0xff]
        %v1505 = vld [vmem:[#allocation2 + $0x8] sm:$0xff]
        %v1506 = vld [vmem:[%s5] sm:$0xff]
        %v1507 = vld [vmem:[%s5 + $0x8] sm:$0xff]
        %v1508 = vld [vmem:[%s5 + $0x10] sm:$0xff]
        %v1509 = vld [vmem:[%s5 + $0x18] sm:$0xff]
        %v1510 = vld [vmem:[%s5 + $0x20] sm:$0xff]
        %v1511 = vld [vmem:[%s5 + $0x28] sm:$0xff]
        %v1512 = vld [vmem:[%s5 + $0x30] sm:$0xff]
        %v1513 = vld [vmem:[%s5 + $0x38] sm:$0xff]
        %v1514 = vld [vmem:[%s5 + $0x40] sm:$0xff]
        %v1515 = vld [vmem:[%s5 + $0x48] sm:$0xff]
        %v1516 = vld [vmem:[%s5 + $0x50] sm:$0xff]
        %v1517 = vld [vmem:[%s5 + $0x58] sm:$0xff]
        %v1518 = vld [vmem:[%s5 + $0x60] sm:$0xff]
        %v1519 = vld [vmem:[%s5 + $0x68] sm:$0xff]
        %v1520 = vld [vmem:[%s5 + $0x70] sm:$0xff]
        %v1521 = vld [vmem:[%s5 + $0x78] sm:$0xff]
        %v1522 = vld [vmem:[#allocation4] sm:$0x1]
        %v1524 = vlaneseq
        %v1525 = vshrl.u32 %v1524, 7
        %v1526 = vsub.s32 0, %v1525
        %v1527 = vrot.slane %v1522, %v1526
        %1529 = vmatprep.subr.mxu0 0.0
        %1530 = vmatpush1.msra.mxu0 %v1521
        %1531 = vmatprep.subr.mxu0 0.0
        %1532 = vmatpush1.msra.mxu0 %v1520
        %1533 = vmatprep.subr.mxu0 0.0
        %1534 = vmatpush1.msra.mxu0 %v1519
        %1535 = vmatprep.subr.mxu0 0.0
        %1536 = vmatpush1.msra.mxu0 %v1518
        %1537 = vmatprep.subr.mxu0 0.0
        %1538 = vmatpush1.msra.mxu0 %v1517
        %1539 = vmatprep.subr.mxu0 0.0
        %1540 = vmatpush1.msra.mxu0 %v1516
        %1541 = vmatprep.subr.mxu0 0.0
        %1542 = vmatpush1.msra.mxu0 %v1515
        %1543 = vmatprep.subr.mxu0 0.0
        %1544 = vmatpush1.msra.mxu0 %v1514
        %1545 = vmatprep.subr.mxu0 0.0
        %1546 = vmatpush1.msra.mxu0 %v1513
        %1547 = vmatprep.subr.mxu0 0.0
        %1548 = vmatpush1.msra.mxu0 %v1512
        %1549 = vmatprep.subr.mxu0 0.0
        %1550 = vmatpush1.msra.mxu0 %v1511
        %1551 = vmatprep.subr.mxu0 0.0
        %1552 = vmatpush1.msra.mxu0 %v1510
        %1553 = vmatprep.subr.mxu0 0.0
        %1554 = vmatpush1.msra.mxu0 %v1509
        %1555 = vmatprep.subr.mxu0 0.0
        %1556 = vmatpush1.msra.mxu0 %v1508
        %1557 = vmatprep.subr.mxu0 0.0
        %1558 = vmatpush1.msra.mxu0 %v1507
        %1559 = vmatprep.subr.mxu0 0.0
        %1560 = vmatpush1.msra.mxu0 %v1506
        %1561 = vmatprep.subr.mxu0 0.0
        %1562 = vmatpush2.msra.mxu0 0.0
        %1563 = vmatprep.subr.mxu0 0.0
        %1564 = vmatpush2.msra.mxu0 0.0
        %1565 = vmatprep.subr.mxu0 0.0
        %1566 = vmatpush2.msra.mxu0 0.0
        %1567 = vmatprep.subr.mxu0 0.0
        %1568 = vmatpush2.msra.mxu0 0.0
        %1569 = vmatprep.subr.mxu0 0.0
        %1570 = vmatpush2.msra.mxu0 0.0
        %1571 = vmatprep.subr.mxu0 0.0
        %1572 = vmatpush2.msra.mxu0 0.0
        %1573 = vmatprep.subr.mxu0 0.0
        %1574 = vmatpush2.msra.mxu0 0.0
        %1575 = vmatprep.subr.mxu0 0.0
        %1576 = vmatpush2.msra.mxu0 0.0
        %1577 = vmatprep.subr.mxu0 0.0
        %1578 = vmatpush2.msra.mxu0 0.0
        %1579 = vmatprep.subr.mxu0 0.0
        %1580 = vmatpush2.msra.mxu0 0.0
        %1581 = vmatprep.subr.mxu0 0.0
        %1582 = vmatpush2.msra.mxu0 0.0
        %1583 = vmatprep.subr.mxu0 0.0
        %1584 = vmatpush2.msra.mxu0 0.0
        %1585 = vmatprep.subr.mxu0 0.0
        %1586 = vmatpush2.msra.mxu0 0.0
        %1587 = vmatprep.subr.mxu0 0.0
        %1588 = vmatpush2.msra.mxu0 0.0
        %1589 = vmatprep.subr.mxu0 0.0
        %1590 = vmatpush2.msra.mxu0 0.0
        %1591 = vmatprep.subr.mxu0 0.0
        %1592 = vmatpush2.msra.mxu0 0.0
        %1593 = vmatprep.mubr.f32.mxu0 0.0
        %1594 = vmatmul.mubr.f32.gmra.mxu0 %v1504
        %v1595 = vpop.f32.mrf.mxu0
        %v1596 = vadd.f32 %v1527, %v1595
        %v1597 = vpop.f32.mrf.mxu0
        %1598 = vmatprep.mubr.f32.mxu0 0.0
        %1599 = vmatmul.mubr.f32.gmra.mxu0 %v1505
        %v1600 = vpop.f32.mrf.mxu0
        %v1601 = vadd.f32 %v1527, %v1600
        %v1602 = vpop.f32.mrf.mxu0
        %1603 = vdwg.mxu0
        %vm1604 = vcmask 7168
        %1605 = vst.msk [vmem:[%s341] sm:$0xff] %vm1604, %v1596
        %1606 = vst.msk [vmem:[%s341 + $0x8] sm:$0xff] %vm1604, %v1601
        %v1607 = vxor.u32 %v1596, 2147483648
        %v1608 = vxor.u32 %v1601, 2147483648
        %v1609 = vmul.f32 %v1607, 1.442695
        %v1610 = vpow.pop %v1609
        %v1611 = vmul.f32 %v1608, 1.442695
        %v1612 = vpow.pop %v1611
        %v1613 = vadd.f32 %v1610, 1.0
        %v1614 = vadd.f32 %v1612, 1.0
        %v1615 = vrcp.pop %v1613
        %v1616 = vmul.f32 1.0, %v1615
        %v1617 = vrcp.pop %v1614
        %v1618 = vmul.f32 1.0, %v1617
        %1619 = vst.msk [vmem:[%s347] sm:$0xff] %vm1604, %v1616
        %1620 = vst.msk [vmem:[%s347 + $0x8] sm:$0xff] %vm1604, %v1618
      $region56: #{discriminator_forward.1} parent=47 // pred_fallthru
        _
      %s1621 = smul.u32 2, %s26
      %p1622 = scmp.lt.s32.totalorder %s1621, 3
      %s1623 = scalar_select %p1622, %s1621, 3
      %s1624 = smul.addr %s1623, 8
      %s1625 = scalar_lea.vmem %s7, %s1624
      %s1626 = smul.u32 2, %s26
      %p1627 = scmp.lt.s32.totalorder %s1626, 3
      %s1628 = scalar_select %p1627, %s1626, 3
      %s1629 = smul.addr %s1628, 8
      %s1630 = scalar_lea.vmem %s8, %s1629
      // Predicated region
      $region57: #{discriminator_forward.1} parent=47 // pred_check
        %p1631 = pneg %p206
      $region58: #{discriminator_forward.1} parent=47 // pred_check_branch
        %1633 = sbr.rel (%p1631) target = $region60
      $region59: #{discriminator_forward.1} parent=47 // pred_region
        %s1634 = smul.u32 2, %s26
      $region60: #{discriminator_forward.1} parent=47 // pred_fallthru
        _
      // Predicated region
      $region61: #{discriminator_forward.1} parent=47 // pred_check
        %p1635 = pneg %p232
      $region62: #{discriminator_forward.1} parent=47 // pred_check_branch
        %1637 = sbr.rel (%p1635) target = $region64
      $region63: #{discriminator_forward.1} parent=47 // pred_region
        %s1638 = smul.u32 2, %s26
      $region64: #{discriminator_forward.1} parent=47 // pred_fallthru
        _
    $region48: #{discriminator_forward.1} parent=5 // pred_fallthru
      _
    %p1639 = scmp.le.s32.totalorder 2, %s17
    // Predicated region
    $region65: #{discriminator_forward.1} parent=5 // pred_check
      %p1640 = pneg %p1639
    $region66: #{discriminator_forward.1} parent=5 // pred_check_branch
      %1642 = sbr.rel (%p1640) target = $region68
    $region67: #{discriminator_forward.1} parent=5 // pred_region
      %s1643 = ssub.s32 %s17, 2
      // Predicated region
      $region69: #{discriminator_forward.1} parent=67 // pred_check
        %p1644 = pneg %p212
      $region70: #{discriminator_forward.1} parent=67 // pred_check_branch
        %1646 = sbr.rel (%p1644) target = $region72
      $region71: #{discriminator_forward.1} parent=67 // pred_region
        %s1647 = smul.u32 2, %s28
        %p1648 = scmp.lt.s32.totalorder %s1647, 3
        %s1649 = scalar_select %p1648, %s1647, 3
        %s1650 = smul.addr %s1649, 8
        %s1651 = scalar_lea.vmem %s7, %s1650
      $region72: #{discriminator_forward.1} parent=67 // pred_fallthru
        _
      // Predicated region
      $region73: #{discriminator_forward.1} parent=67 // pred_check
        %p1652 = pneg %p238
      $region74: #{discriminator_forward.1} parent=67 // pred_check_branch
        %1654 = sbr.rel (%p1652) target = $region76
      $region75: #{discriminator_forward.1} parent=67 // pred_region
        %s1655 = smul.u32 2, %s28
        %p1656 = scmp.lt.s32.totalorder %s1655, 3
        %s1657 = scalar_select %p1656, %s1655, 3
        %s1658 = smul.addr %s1657, 8
        %s1659 = scalar_lea.vmem %s8, %s1658
      $region76: #{discriminator_forward.1} parent=67 // pred_fallthru
        _
    $region68: #{discriminator_forward.1} parent=5 // pred_fallthru
      _
  $region6: #{discriminator_forward.1} parent=0 // loop_footer
    %s21 = sadd.s32 1, %s17
  $region7: #{discriminator_forward.1} parent=0 // loop_footer_branch
    %16 = sbr.rel target = $region3
  $region8: #{discriminator_forward.1} parent=0 // loop_exit
    _

</llo_original>
